<compile_context>
chip_gen: v7x
topology: tpu7x:2x2x1
jax: 0.10.0
libtpu: 0.0.40
codegen_flags: <defaults>
</compile_context>

<pallas_src>
import functools

import jax
import jax.numpy as jnp
from jax.experimental import pallas as pl
from jax.experimental.pallas import tpu as pltpu


# ----------------------------------------------------------------------------
# Fused kernel: geMLP -> dMLP -> concat -> combineMLP, all in one body.
# ----------------------------------------------------------------------------
def _fused_mlp_kernel(alpha_ref, xg_ref, xd_ref, *refs, n_ge, n_d, n_comb):
    # refs layout: [w0,b0, w1,b1, ..., w9,b9, o_ref, comb_scratch]
    n_layers = n_ge + n_d + n_comb
    wb_refs = refs[: 2 * n_layers]
    o_ref = refs[2 * n_layers]
    comb_ref = refs[2 * n_layers + 1]

    def layer(x_f32, li, apply_prelu):
        w_ref = wb_refs[2 * li]          # (in, out), bf16
        b_ref = wb_refs[2 * li + 1]      # (1, out), f32
        y = jnp.dot(x_f32.astype(w_ref.dtype), w_ref[...],
                    preferred_element_type=jnp.float32)
        y = y + b_ref[...]
        if apply_prelu:
            a = alpha_ref[li]            # scalar read from SMEM
            y = jnp.where(y >= 0, y, a * y)
        return y

    # geMLP chain: ge_latent -> 256 -> 256 -> 64
    ge = xg_ref[...].astype(jnp.float32)
    for li in range(0, n_ge):
        ge = layer(ge, li, True)

    # dMLP chain: drug_latent -> 128 -> 128 -> 64
    d = xd_ref[...].astype(jnp.float32)
    for li in range(n_ge, n_ge + n_d):
        d = layer(d, li, True)

    # torch.cat([ge, d], dim=1) -> write both halves into one (TB, 128) scratch
    comb_ref[:, 0:64] = ge
    comb_ref[:, 64:128] = d
    res = comb_ref[...]

    # combineMLP: 128 -> 128 -> 128 -> 64 -> 1 (last layer has no PReLU)
    for li in range(n_ge + n_d, n_layers - 1):
        res = layer(res, li, True)
    res = layer(res, n_layers - 1, False)

    o_ref[...] = res.astype(o_ref.dtype)


def _pick_batch_tile(B):
    for tb in (512, 256, 128):
        if B >= tb and B % tb == 0:
            return tb
    return B


def mlp_simple_forward(params, ge_latent_vec, d_latent_vec):
    """Fused forward pass. ge_latent_vec: (B, ge_dim), d_latent_vec: (B, d_dim)."""
    B, ge_dim = ge_latent_vec.shape
    _, d_dim = d_latent_vec.shape
    TB = _pick_batch_tile(B)
    grid = (B // TB,)

    layers = params["layers"]          # list of 10 (w_io, b_1xout)
    alphas = params["alphas"]          # (9,) f32

    in_specs = [
        pl.BlockSpec(memory_space=pltpu.MemorySpace.SMEM),          # alphas
        pl.BlockSpec((TB, ge_dim), lambda i: (i, 0)),               # ge input
        pl.BlockSpec((TB, d_dim), lambda i: (i, 0)),                # drug input
    ]
    args = [alphas,
            ge_latent_vec.astype(jnp.float32),
            d_latent_vec.astype(jnp.float32)]
    for w, b in layers:
        # weights/biases: full-array blocks, constant index_map -> VMEM-resident
        in_specs.append(pl.BlockSpec(w.shape, lambda i: (0, 0)))
        in_specs.append(pl.BlockSpec(b.shape, lambda i: (0, 0)))
        args.append(w)
        args.append(b)

    kernel = functools.partial(_fused_mlp_kernel, n_ge=3, n_d=3, n_comb=4)
    return pl.pallas_call(
        kernel,
        out_shape=jax.ShapeDtypeStruct((B, 1), jnp.float32),
        grid_spec=pltpu.PrefetchScalarGridSpec(
            num_scalar_prefetch=0,
            grid=grid,
            in_specs=in_specs,
            out_specs=pl.BlockSpec((TB, 1), lambda i: (i, 0)),
            scratch_shapes=[pltpu.VMEM((TB, 128), jnp.float32)],
        ),
        compiler_params=pltpu.CompilerParams(
            dimension_semantics=("parallel",),
        ),
    )(*args)


# ----------------------------------------------------------------------------
# Parameter construction — already in kernel layout:
#   W stored as (in, out) bf16, b as (1, out) f32, PReLU alphas as one (9,) f32.
# ----------------------------------------------------------------------------
_LAYER_DIMS = lambda d_lat, ge_lat: [
    (ge_lat, 256), (256, 256), (256, 64),       # geMLP
    (d_lat, 128), (128, 128), (128, 64),        # dMLP
    (128, 128), (128, 128), (128, 64), (64, 1), # combineMLP
]


def init_mlp_simple_params(key, drug_latent_size, ge_latent_size,
                           weight_dtype=jnp.bfloat16):
    dims = _LAYER_DIMS(drug_latent_size, ge_latent_size)
    keys = jax.random.split(key, len(dims))
    layers = []
    for k, (din, dout) in zip(keys, dims):
        kw, kb = jax.random.split(k)
        bound = float(1.0 / (din ** 0.5))
        w_oi = jax.random.uniform(kw, (dout, din), jnp.float32, -bound, bound)
        b = jax.random.uniform(kb, (dout,), jnp.float32, -bound, bound)
        layers.append((jnp.transpose(w_oi).astype(weight_dtype),   # (in, out)
                       b.reshape(1, dout).astype(jnp.float32)))
    alphas = jnp.full((9,), 0.25, jnp.float32)   # nn.PReLU() default init
    return {"layers": layers, "alphas": alphas}


# ----------------------------------------------------------------------------
# Pure-JAX reference (mirrors the kernel's bf16 MXU inputs, f32 accumulate).
# ----------------------------------------------------------------------------
def _forward_ref(params, ge_latent_vec, d_latent_vec):
    layers = params["layers"]
    alphas = params["alphas"]

    def lin(x, w, b, a):
        xq = x.astype(jnp.bfloat16).astype(jnp.float32)
        y = xq @ w.astype(jnp.float32) + b
        if a is not None:
            y = jnp.where(y >= 0, y, a * y)
        return y

    ge = ge_latent_vec
    for li in range(0, 3):
        ge = lin(ge, *layers[li], alphas[li])
    d = d_latent_vec
    for li in range(3, 6):
        d = lin(d, *layers[li], alphas[li])
    res = jnp.concatenate([ge, d], axis=1)
    for li in range(6, 9):
        res = lin(res, *layers[li], alphas[li])
    res = lin(res, *layers[9], None)
    return res


if __name__ == "__main__":
    drug_latent_size = 16
    ge_latent_size = 32
    batch = 8

    key = jax.random.PRNGKey(0)
    kp, kg, kd = jax.random.split(key, 3)

    params = init_mlp_simple_params(kp, drug_latent_size, ge_latent_size)
    ge_latent = jax.random.normal(kg, (batch, ge_latent_size), jnp.float32)
    d_latent = jax.random.normal(kd, (batch, drug_latent_size), jnp.float32)

    out = mlp_simple_forward(params, ge_latent, d_latent)
    out = jax.block_until_ready(out)

    ref = _forward_ref(params, ge_latent, d_latent)
    assert out.shape == (batch, 1)
    assert jnp.allclose(out, ref, atol=5e-4, rtol=5e-4), (
        f"max abs diff {float(jnp.max(jnp.abs(out - ref)))}")

    print("KERNEL_OK")
</pallas_src>

<mosaic_0001>
module attributes {stable_mosaic.version = 11 : i64} {
  func.func @_fused_mlp_kernel(%arg0: i32, %arg1: memref<9xf32, #tpu.memory_space<smem>>, %arg2: memref<8x32xf32, #tpu.memory_space<vmem>>, %arg3: memref<8x16xf32, #tpu.memory_space<vmem>>, %arg4: memref<32x256xbf16, #tpu.memory_space<vmem>>, %arg5: memref<1x256xf32, #tpu.memory_space<vmem>>, %arg6: memref<256x256xbf16, #tpu.memory_space<vmem>>, %arg7: memref<1x256xf32, #tpu.memory_space<vmem>>, %arg8: memref<256x64xbf16, #tpu.memory_space<vmem>>, %arg9: memref<1x64xf32, #tpu.memory_space<vmem>>, %arg10: memref<16x128xbf16, #tpu.memory_space<vmem>>, %arg11: memref<1x128xf32, #tpu.memory_space<vmem>>, %arg12: memref<128x128xbf16, #tpu.memory_space<vmem>>, %arg13: memref<1x128xf32, #tpu.memory_space<vmem>>, %arg14: memref<128x64xbf16, #tpu.memory_space<vmem>>, %arg15: memref<1x64xf32, #tpu.memory_space<vmem>>, %arg16: memref<128x128xbf16, #tpu.memory_space<vmem>>, %arg17: memref<1x128xf32, #tpu.memory_space<vmem>>, %arg18: memref<128x128xbf16, #tpu.memory_space<vmem>>, %arg19: memref<1x128xf32, #tpu.memory_space<vmem>>, %arg20: memref<128x64xbf16, #tpu.memory_space<vmem>>, %arg21: memref<1x64xf32, #tpu.memory_space<vmem>>, %arg22: memref<64x1xbf16, #tpu.memory_space<vmem>>, %arg23: memref<1x1xf32, #tpu.memory_space<vmem>>, %arg24: memref<8x1xf32, #tpu.memory_space<vmem>>, %arg25: memref<8x128xf32, #tpu.memory_space<vmem>>) attributes {dimension_semantics = [#tpu.dimension_semantics<parallel>], iteration_bounds = array<i64: 1>, scalar_prefetch = 0 : i64, scratch_operands = 1 : i64, tpu.core_type = #tpu.core_type<tc>, window_params = [{transform_indices = @transform_0, window_bounds = array<i64: 9>}, {transform_indices = @transform_1, window_bounds = array<i64: 8, 32>}, {transform_indices = @transform_2, window_bounds = array<i64: 8, 16>}, {pipeline_mode = #tpu.pipeline_mode<synchronous>, transform_indices = @transform_3, window_bounds = array<i64: 32, 256>}, {pipeline_mode = #tpu.pipeline_mode<synchronous>, transform_indices = @transform_4, window_bounds = array<i64: 1, 256>}, {pipeline_mode = #tpu.pipeline_mode<synchronous>, transform_indices = @transform_5, window_bounds = array<i64: 256, 256>}, {pipeline_mode = #tpu.pipeline_mode<synchronous>, transform_indices = @transform_6, window_bounds = array<i64: 1, 256>}, {pipeline_mode = #tpu.pipeline_mode<synchronous>, transform_indices = @transform_7, window_bounds = array<i64: 256, 64>}, {pipeline_mode = #tpu.pipeline_mode<synchronous>, transform_indices = @transform_8, window_bounds = array<i64: 1, 64>}, {pipeline_mode = #tpu.pipeline_mode<synchronous>, transform_indices = @transform_9, window_bounds = array<i64: 16, 128>}, {pipeline_mode = #tpu.pipeline_mode<synchronous>, transform_indices = @transform_10, window_bounds = array<i64: 1, 128>}, {pipeline_mode = #tpu.pipeline_mode<synchronous>, transform_indices = @transform_11, window_bounds = array<i64: 128, 128>}, {pipeline_mode = #tpu.pipeline_mode<synchronous>, transform_indices = @transform_12, window_bounds = array<i64: 1, 128>}, {pipeline_mode = #tpu.pipeline_mode<synchronous>, transform_indices = @transform_13, window_bounds = array<i64: 128, 64>}, {pipeline_mode = #tpu.pipeline_mode<synchronous>, transform_indices = @transform_14, window_bounds = array<i64: 1, 64>}, {pipeline_mode = #tpu.pipeline_mode<synchronous>, transform_indices = @transform_15, window_bounds = array<i64: 128, 128>}, {pipeline_mode = #tpu.pipeline_mode<synchronous>, transform_indices = @transform_16, window_bounds = array<i64: 1, 128>}, {pipeline_mode = #tpu.pipeline_mode<synchronous>, transform_indices = @transform_17, window_bounds = array<i64: 128, 128>}, {pipeline_mode = #tpu.pipeline_mode<synchronous>, transform_indices = @transform_18, window_bounds = array<i64: 1, 128>}, {pipeline_mode = #tpu.pipeline_mode<synchronous>, transform_indices = @transform_19, window_bounds = array<i64: 128, 64>}, {pipeline_mode = #tpu.pipeline_mode<synchronous>, transform_indices = @transform_20, window_bounds = array<i64: 1, 64>}, {pipeline_mode = #tpu.pipeline_mode<synchronous>, transform_indices = @transform_21, window_bounds = array<i64: 64, 1>}, {pipeline_mode = #tpu.pipeline_mode<synchronous>, transform_indices = @transform_22, window_bounds = array<i64: 1, 1>}, {transform_indices = @transform_23, window_bounds = array<i64: 8, 1>}]} {
    %c0 = arith.constant 0 : index
    %c0_0 = arith.constant 0 : index
    %0 = vector.load %arg2[%c0, %c0_0] : memref<8x32xf32, #tpu.memory_space<vmem>>, vector<8x32xf32>
    %1 = arith.truncf %0 : vector<8x32xf32> to vector<8x32xbf16>
    %c0_1 = arith.constant 0 : index
    %c0_2 = arith.constant 0 : index
    %2 = vector.load %arg4[%c0_1, %c0_2] : memref<32x256xbf16, #tpu.memory_space<vmem>>, vector<32x256xbf16>
    %cst = arith.constant dense<0.000000e+00> : vector<8x256xf32>
    %3 = tpu.matmul %1, %2, %cst {dimension_numbers = #tpu.dot_dimension_numbers<[1], [0], [0], [1], [0, 0, 1, 1], [], []>} : vector<8x32xbf16>, vector<32x256xbf16>, vector<8x256xf32> -> vector<8x256xf32>
    %c0_3 = arith.constant 0 : index
    %c0_4 = arith.constant 0 : index
    %4 = vector.load %arg5[%c0_3, %c0_4] : memref<1x256xf32, #tpu.memory_space<vmem>>, vector<1x256xf32>
    %5 = vector.broadcast %4 : vector<1x256xf32> to vector<8x256xf32>
    %6 = arith.addf %3, %5 : vector<8x256xf32>
    %c0_5 = arith.constant 0 : index
    %7 = memref.load %arg1[%c0_5] : memref<9xf32, #tpu.memory_space<smem>>
    %cst_6 = arith.constant 0.000000e+00 : f32
    %8 = vector.broadcast %cst_6 : f32 to vector<8x256xf32>
    %9 = arith.cmpf oge, %6, %8 : vector<8x256xf32>
    %10 = vector.broadcast %7 : f32 to vector<8x256xf32>
    %11 = arith.mulf %10, %6 : vector<8x256xf32>
    %12 = arith.select %9, %6, %11 : vector<8x256xi1>, vector<8x256xf32>
    %13 = arith.truncf %12 : vector<8x256xf32> to vector<8x256xbf16>
    %c0_7 = arith.constant 0 : index
    %c0_8 = arith.constant 0 : index
    %14 = vector.load %arg6[%c0_7, %c0_8] : memref<256x256xbf16, #tpu.memory_space<vmem>>, vector<256x256xbf16>
    %cst_9 = arith.constant dense<0.000000e+00> : vector<8x256xf32>
    %15 = tpu.matmul %13, %14, %cst_9 {dimension_numbers = #tpu.dot_dimension_numbers<[1], [0], [0], [1], [0, 0, 1, 1], [], []>} : vector<8x256xbf16>, vector<256x256xbf16>, vector<8x256xf32> -> vector<8x256xf32>
    %c0_10 = arith.constant 0 : index
    %c0_11 = arith.constant 0 : index
    %16 = vector.load %arg7[%c0_10, %c0_11] : memref<1x256xf32, #tpu.memory_space<vmem>>, vector<1x256xf32>
    %17 = vector.broadcast %16 : vector<1x256xf32> to vector<8x256xf32>
    %18 = arith.addf %15, %17 : vector<8x256xf32>
    %c1 = arith.constant 1 : index
    %19 = memref.load %arg1[%c1] : memref<9xf32, #tpu.memory_space<smem>>
    %cst_12 = arith.constant 0.000000e+00 : f32
    %20 = vector.broadcast %cst_12 : f32 to vector<8x256xf32>
    %21 = arith.cmpf oge, %18, %20 : vector<8x256xf32>
    %22 = vector.broadcast %19 : f32 to vector<8x256xf32>
    %23 = arith.mulf %22, %18 : vector<8x256xf32>
    %24 = arith.select %21, %18, %23 : vector<8x256xi1>, vector<8x256xf32>
    %25 = arith.truncf %24 : vector<8x256xf32> to vector<8x256xbf16>
    %c0_13 = arith.constant 0 : index
    %c0_14 = arith.constant 0 : index
    %26 = vector.load %arg8[%c0_13, %c0_14] : memref<256x64xbf16, #tpu.memory_space<vmem>>, vector<256x64xbf16>
    %cst_15 = arith.constant dense<0.000000e+00> : vector<8x64xf32>
    %27 = tpu.matmul %25, %26, %cst_15 {dimension_numbers = #tpu.dot_dimension_numbers<[1], [0], [0], [1], [0, 0, 1, 1], [], []>} : vector<8x256xbf16>, vector<256x64xbf16>, vector<8x64xf32> -> vector<8x64xf32>
    %c0_16 = arith.constant 0 : index
    %c0_17 = arith.constant 0 : index
    %28 = vector.load %arg9[%c0_16, %c0_17] : memref<1x64xf32, #tpu.memory_space<vmem>>, vector<1x64xf32>
    %29 = vector.broadcast %28 : vector<1x64xf32> to vector<8x64xf32>
    %30 = arith.addf %27, %29 : vector<8x64xf32>
    %c2 = arith.constant 2 : index
    %31 = memref.load %arg1[%c2] : memref<9xf32, #tpu.memory_space<smem>>
    %cst_18 = arith.constant 0.000000e+00 : f32
    %32 = vector.broadcast %cst_18 : f32 to vector<8x64xf32>
    %33 = arith.cmpf oge, %30, %32 : vector<8x64xf32>
    %34 = vector.broadcast %31 : f32 to vector<8x64xf32>
    %35 = arith.mulf %34, %30 : vector<8x64xf32>
    %36 = arith.select %33, %30, %35 : vector<8x64xi1>, vector<8x64xf32>
    %c0_19 = arith.constant 0 : index
    %c0_20 = arith.constant 0 : index
    %37 = vector.load %arg3[%c0_19, %c0_20] : memref<8x16xf32, #tpu.memory_space<vmem>>, vector<8x16xf32>
    %38 = arith.truncf %37 : vector<8x16xf32> to vector<8x16xbf16>
    %c0_21 = arith.constant 0 : index
    %c0_22 = arith.constant 0 : index
    %39 = vector.load %arg10[%c0_21, %c0_22] : memref<16x128xbf16, #tpu.memory_space<vmem>>, vector<16x128xbf16>
    %cst_23 = arith.constant dense<0.000000e+00> : vector<8x128xf32>
    %40 = tpu.matmul %38, %39, %cst_23 {dimension_numbers = #tpu.dot_dimension_numbers<[1], [0], [0], [1], [0, 0, 1, 1], [], []>} : vector<8x16xbf16>, vector<16x128xbf16>, vector<8x128xf32> -> vector<8x128xf32>
    %c0_24 = arith.constant 0 : index
    %c0_25 = arith.constant 0 : index
    %41 = vector.load %arg11[%c0_24, %c0_25] : memref<1x128xf32, #tpu.memory_space<vmem>>, vector<1x128xf32>
    %42 = vector.broadcast %41 : vector<1x128xf32> to vector<8x128xf32>
    %43 = arith.addf %40, %42 : vector<8x128xf32>
    %c3 = arith.constant 3 : index
    %44 = memref.load %arg1[%c3] : memref<9xf32, #tpu.memory_space<smem>>
    %cst_26 = arith.constant 0.000000e+00 : f32
    %45 = vector.broadcast %cst_26 : f32 to vector<8x128xf32>
    %46 = arith.cmpf oge, %43, %45 : vector<8x128xf32>
    %47 = vector.broadcast %44 : f32 to vector<8x128xf32>
    %48 = arith.mulf %47, %43 : vector<8x128xf32>
    %49 = arith.select %46, %43, %48 : vector<8x128xi1>, vector<8x128xf32>
    %50 = arith.truncf %49 : vector<8x128xf32> to vector<8x128xbf16>
    %c0_27 = arith.constant 0 : index
    %c0_28 = arith.constant 0 : index
    %51 = vector.load %arg12[%c0_27, %c0_28] : memref<128x128xbf16, #tpu.memory_space<vmem>>, vector<128x128xbf16>
    %cst_29 = arith.constant dense<0.000000e+00> : vector<8x128xf32>
    %52 = tpu.matmul %50, %51, %cst_29 {dimension_numbers = #tpu.dot_dimension_numbers<[1], [0], [0], [1], [0, 0, 1, 1], [], []>} : vector<8x128xbf16>, vector<128x128xbf16>, vector<8x128xf32> -> vector<8x128xf32>
    %c0_30 = arith.constant 0 : index
    %c0_31 = arith.constant 0 : index
    %53 = vector.load %arg13[%c0_30, %c0_31] : memref<1x128xf32, #tpu.memory_space<vmem>>, vector<1x128xf32>
    %54 = vector.broadcast %53 : vector<1x128xf32> to vector<8x128xf32>
    %55 = arith.addf %52, %54 : vector<8x128xf32>
    %c4 = arith.constant 4 : index
    %56 = memref.load %arg1[%c4] : memref<9xf32, #tpu.memory_space<smem>>
    %cst_32 = arith.constant 0.000000e+00 : f32
    %57 = vector.broadcast %cst_32 : f32 to vector<8x128xf32>
    %58 = arith.cmpf oge, %55, %57 : vector<8x128xf32>
    %59 = vector.broadcast %56 : f32 to vector<8x128xf32>
    %60 = arith.mulf %59, %55 : vector<8x128xf32>
    %61 = arith.select %58, %55, %60 : vector<8x128xi1>, vector<8x128xf32>
    %62 = arith.truncf %61 : vector<8x128xf32> to vector<8x128xbf16>
    %c0_33 = arith.constant 0 : index
    %c0_34 = arith.constant 0 : index
    %63 = vector.load %arg14[%c0_33, %c0_34] : memref<128x64xbf16, #tpu.memory_space<vmem>>, vector<128x64xbf16>
    %cst_35 = arith.constant dense<0.000000e+00> : vector<8x64xf32>
    %64 = tpu.matmul %62, %63, %cst_35 {dimension_numbers = #tpu.dot_dimension_numbers<[1], [0], [0], [1], [0, 0, 1, 1], [], []>} : vector<8x128xbf16>, vector<128x64xbf16>, vector<8x64xf32> -> vector<8x64xf32>
    %c0_36 = arith.constant 0 : index
    %c0_37 = arith.constant 0 : index
    %65 = vector.load %arg15[%c0_36, %c0_37] : memref<1x64xf32, #tpu.memory_space<vmem>>, vector<1x64xf32>
    %66 = vector.broadcast %65 : vector<1x64xf32> to vector<8x64xf32>
    %67 = arith.addf %64, %66 : vector<8x64xf32>
    %c5 = arith.constant 5 : index
    %68 = memref.load %arg1[%c5] : memref<9xf32, #tpu.memory_space<smem>>
    %cst_38 = arith.constant 0.000000e+00 : f32
    %69 = vector.broadcast %cst_38 : f32 to vector<8x64xf32>
    %70 = arith.cmpf oge, %67, %69 : vector<8x64xf32>
    %71 = vector.broadcast %68 : f32 to vector<8x64xf32>
    %72 = arith.mulf %71, %67 : vector<8x64xf32>
    %73 = arith.select %70, %67, %72 : vector<8x64xi1>, vector<8x64xf32>
    %c0_39 = arith.constant 0 : index
    %c0_40 = arith.constant 0 : index
    %74 = vector.load %arg25[%c0_39, %c0_40] : memref<8x128xf32, #tpu.memory_space<vmem>>, vector<8x64xf32>
    tpu.vector_store %arg25[%c0_39, %c0_40], %36 {strides = array<i32>} : memref<8x128xf32, #tpu.memory_space<vmem>>, vector<8x64xf32>,
    %c0_41 = arith.constant 0 : index
    %c64 = arith.constant 64 : index
    %75 = vector.load %arg25[%c0_41, %c64] : memref<8x128xf32, #tpu.memory_space<vmem>>, vector<8x64xf32>
    tpu.vector_store %arg25[%c0_41, %c64], %73 {strides = array<i32>} : memref<8x128xf32, #tpu.memory_space<vmem>>, vector<8x64xf32>,
    %c0_42 = arith.constant 0 : index
    %c0_43 = arith.constant 0 : index
    %76 = vector.load %arg25[%c0_42, %c0_43] : memref<8x128xf32, #tpu.memory_space<vmem>>, vector<8x128xf32>
    %77 = arith.truncf %76 : vector<8x128xf32> to vector<8x128xbf16>
    %c0_44 = arith.constant 0 : index
    %c0_45 = arith.constant 0 : index
    %78 = vector.load %arg16[%c0_44, %c0_45] : memref<128x128xbf16, #tpu.memory_space<vmem>>, vector<128x128xbf16>
    %cst_46 = arith.constant dense<0.000000e+00> : vector<8x128xf32>
    %79 = tpu.matmul %77, %78, %cst_46 {dimension_numbers = #tpu.dot_dimension_numbers<[1], [0], [0], [1], [0, 0, 1, 1], [], []>} : vector<8x128xbf16>, vector<128x128xbf16>, vector<8x128xf32> -> vector<8x128xf32>
    %c0_47 = arith.constant 0 : index
    %c0_48 = arith.constant 0 : index
    %80 = vector.load %arg17[%c0_47, %c0_48] : memref<1x128xf32, #tpu.memory_space<vmem>>, vector<1x128xf32>
    %81 = vector.broadcast %80 : vector<1x128xf32> to vector<8x128xf32>
    %82 = arith.addf %79, %81 : vector<8x128xf32>
    %c6 = arith.constant 6 : index
    %83 = memref.load %arg1[%c6] : memref<9xf32, #tpu.memory_space<smem>>
    %cst_49 = arith.constant 0.000000e+00 : f32
    %84 = vector.broadcast %cst_49 : f32 to vector<8x128xf32>
    %85 = arith.cmpf oge, %82, %84 : vector<8x128xf32>
    %86 = vector.broadcast %83 : f32 to vector<8x128xf32>
    %87 = arith.mulf %86, %82 : vector<8x128xf32>
    %88 = arith.select %85, %82, %87 : vector<8x128xi1>, vector<8x128xf32>
    %89 = arith.truncf %88 : vector<8x128xf32> to vector<8x128xbf16>
    %c0_50 = arith.constant 0 : index
    %c0_51 = arith.constant 0 : index
    %90 = vector.load %arg18[%c0_50, %c0_51] : memref<128x128xbf16, #tpu.memory_space<vmem>>, vector<128x128xbf16>
    %cst_52 = arith.constant dense<0.000000e+00> : vector<8x128xf32>
    %91 = tpu.matmul %89, %90, %cst_52 {dimension_numbers = #tpu.dot_dimension_numbers<[1], [0], [0], [1], [0, 0, 1, 1], [], []>} : vector<8x128xbf16>, vector<128x128xbf16>, vector<8x128xf32> -> vector<8x128xf32>
    %c0_53 = arith.constant 0 : index
    %c0_54 = arith.constant 0 : index
    %92 = vector.load %arg19[%c0_53, %c0_54] : memref<1x128xf32, #tpu.memory_space<vmem>>, vector<1x128xf32>
    %93 = vector.broadcast %92 : vector<1x128xf32> to vector<8x128xf32>
    %94 = arith.addf %91, %93 : vector<8x128xf32>
    %c7 = arith.constant 7 : index
    %95 = memref.load %arg1[%c7] : memref<9xf32, #tpu.memory_space<smem>>
    %cst_55 = arith.constant 0.000000e+00 : f32
    %96 = vector.broadcast %cst_55 : f32 to vector<8x128xf32>
    %97 = arith.cmpf oge, %94, %96 : vector<8x128xf32>
    %98 = vector.broadcast %95 : f32 to vector<8x128xf32>
    %99 = arith.mulf %98, %94 : vector<8x128xf32>
    %100 = arith.select %97, %94, %99 : vector<8x128xi1>, vector<8x128xf32>
    %101 = arith.truncf %100 : vector<8x128xf32> to vector<8x128xbf16>
    %c0_56 = arith.constant 0 : index
    %c0_57 = arith.constant 0 : index
    %102 = vector.load %arg20[%c0_56, %c0_57] : memref<128x64xbf16, #tpu.memory_space<vmem>>, vector<128x64xbf16>
    %cst_58 = arith.constant dense<0.000000e+00> : vector<8x64xf32>
    %103 = tpu.matmul %101, %102, %cst_58 {dimension_numbers = #tpu.dot_dimension_numbers<[1], [0], [0], [1], [0, 0, 1, 1], [], []>} : vector<8x128xbf16>, vector<128x64xbf16>, vector<8x64xf32> -> vector<8x64xf32>
    %c0_59 = arith.constant 0 : index
    %c0_60 = arith.constant 0 : index
    %104 = vector.load %arg21[%c0_59, %c0_60] : memref<1x64xf32, #tpu.memory_space<vmem>>, vector<1x64xf32>
    %105 = vector.broadcast %104 : vector<1x64xf32> to vector<8x64xf32>
    %106 = arith.addf %103, %105 : vector<8x64xf32>
    %c8 = arith.constant 8 : index
    %107 = memref.load %arg1[%c8] : memref<9xf32, #tpu.memory_space<smem>>
    %cst_61 = arith.constant 0.000000e+00 : f32
    %108 = vector.broadcast %cst_61 : f32 to vector<8x64xf32>
    %109 = arith.cmpf oge, %106, %108 : vector<8x64xf32>
    %110 = vector.broadcast %107 : f32 to vector<8x64xf32>
    %111 = arith.mulf %110, %106 : vector<8x64xf32>
    %112 = arith.select %109, %106, %111 : vector<8x64xi1>, vector<8x64xf32>
    %113 = arith.truncf %112 : vector<8x64xf32> to vector<8x64xbf16>
    %c0_62 = arith.constant 0 : index
    %c0_63 = arith.constant 0 : index
    %114 = vector.load %arg22[%c0_62, %c0_63] : memref<64x1xbf16, #tpu.memory_space<vmem>>, vector<64x1xbf16>
    %cst_64 = arith.constant dense<0.000000e+00> : vector<8x1xf32>
    %115 = tpu.matmul %113, %114, %cst_64 {dimension_numbers = #tpu.dot_dimension_numbers<[1], [0], [0], [1], [0, 0, 1, 1], [], []>} : vector<8x64xbf16>, vector<64x1xbf16>, vector<8x1xf32> -> vector<8x1xf32>
    %c0_65 = arith.constant 0 : index
    %c0_66 = arith.constant 0 : index
    %116 = vector.load %arg23[%c0_65, %c0_66] : memref<1x1xf32, #tpu.memory_space<vmem>>, vector<1x1xf32>
    %117 = vector.broadcast %116 : vector<1x1xf32> to vector<8x1xf32>
    %118 = arith.addf %115, %117 : vector<8x1xf32>
    %c0_67 = arith.constant 0 : index
    %c0_68 = arith.constant 0 : index
    %119 = vector.load %arg24[%c0_67, %c0_68] : memref<8x1xf32, #tpu.memory_space<vmem>>, vector<8x1xf32>
    tpu.vector_store %arg24[%c0_67, %c0_68], %118 {strides = array<i32>} : memref<8x1xf32, #tpu.memory_space<vmem>>, vector<8x1xf32>,
    return
  }
  func.func @transform_0(%arg0: i32) -> i32 {
    %c0_i32 = arith.constant 0 : i32
    %c0_i32_0 = arith.constant 0 : i32
    return %c0_i32 : i32
  }
  func.func @transform_1(%arg0: i32) -> (i32, i32) {
    %c0_i32 = arith.constant 0 : i32
    %c0_i32_0 = arith.constant 0 : i32
    return %arg0, %c0_i32 : i32, i32
  }
  func.func @transform_2(%arg0: i32) -> (i32, i32) {
    %c0_i32 = arith.constant 0 : i32
    %c0_i32_0 = arith.constant 0 : i32
    return %arg0, %c0_i32 : i32, i32
  }
  func.func @transform_3(%arg0: i32) -> (i32, i32) {
    %c0_i32 = arith.constant 0 : i32
    %c0_i32_0 = arith.constant 0 : i32
    %c0_i32_1 = arith.constant 0 : i32
    return %c0_i32, %c0_i32_0 : i32, i32
  }
  func.func @transform_4(%arg0: i32) -> (i32, i32) {
    %c0_i32 = arith.constant 0 : i32
    %c0_i32_0 = arith.constant 0 : i32
    %c0_i32_1 = arith.constant 0 : i32
    return %c0_i32, %c0_i32_0 : i32, i32
  }
  func.func @transform_5(%arg0: i32) -> (i32, i32) {
    %c0_i32 = arith.constant 0 : i32
    %c0_i32_0 = arith.constant 0 : i32
    %c0_i32_1 = arith.constant 0 : i32
    return %c0_i32, %c0_i32_0 : i32, i32
  }
  func.func @transform_6(%arg0: i32) -> (i32, i32) {
    %c0_i32 = arith.constant 0 : i32
    %c0_i32_0 = arith.constant 0 : i32
    %c0_i32_1 = arith.constant 0 : i32
    return %c0_i32, %c0_i32_0 : i32, i32
  }
  func.func @transform_7(%arg0: i32) -> (i32, i32) {
    %c0_i32 = arith.constant 0 : i32
    %c0_i32_0 = arith.constant 0 : i32
    %c0_i32_1 = arith.constant 0 : i32
    return %c0_i32, %c0_i32_0 : i32, i32
  }
  func.func @transform_8(%arg0: i32) -> (i32, i32) {
    %c0_i32 = arith.constant 0 : i32
    %c0_i32_0 = arith.constant 0 : i32
    %c0_i32_1 = arith.constant 0 : i32
    return %c0_i32, %c0_i32_0 : i32, i32
  }
  func.func @transform_9(%arg0: i32) -> (i32, i32) {
    %c0_i32 = arith.constant 0 : i32
    %c0_i32_0 = arith.constant 0 : i32
    %c0_i32_1 = arith.constant 0 : i32
    return %c0_i32, %c0_i32_0 : i32, i32
  }
  func.func @transform_10(%arg0: i32) -> (i32, i32) {
    %c0_i32 = arith.constant 0 : i32
    %c0_i32_0 = arith.constant 0 : i32
    %c0_i32_1 = arith.constant 0 : i32
    return %c0_i32, %c0_i32_0 : i32, i32
  }
  func.func @transform_11(%arg0: i32) -> (i32, i32) {
    %c0_i32 = arith.constant 0 : i32
    %c0_i32_0 = arith.constant 0 : i32
    %c0_i32_1 = arith.constant 0 : i32
    return %c0_i32, %c0_i32_0 : i32, i32
  }
  func.func @transform_12(%arg0: i32) -> (i32, i32) {
    %c0_i32 = arith.constant 0 : i32
    %c0_i32_0 = arith.constant 0 : i32
    %c0_i32_1 = arith.constant 0 : i32
    return %c0_i32, %c0_i32_0 : i32, i32
  }
  func.func @transform_13(%arg0: i32) -> (i32, i32) {
    %c0_i32 = arith.constant 0 : i32
    %c0_i32_0 = arith.constant 0 : i32
    %c0_i32_1 = arith.constant 0 : i32
    return %c0_i32, %c0_i32_0 : i32, i32
  }
  func.func @transform_14(%arg0: i32) -> (i32, i32) {
    %c0_i32 = arith.constant 0 : i32
    %c0_i32_0 = arith.constant 0 : i32
    %c0_i32_1 = arith.constant 0 : i32
    return %c0_i32, %c0_i32_0 : i32, i32
  }
  func.func @transform_15(%arg0: i32) -> (i32, i32) {
    %c0_i32 = arith.constant 0 : i32
    %c0_i32_0 = arith.constant 0 : i32
    %c0_i32_1 = arith.constant 0 : i32
    return %c0_i32, %c0_i32_0 : i32, i32
  }
  func.func @transform_16(%arg0: i32) -> (i32, i32) {
    %c0_i32 = arith.constant 0 : i32
    %c0_i32_0 = arith.constant 0 : i32
    %c0_i32_1 = arith.constant 0 : i32
    return %c0_i32, %c0_i32_0 : i32, i32
  }
  func.func @transform_17(%arg0: i32) -> (i32, i32) {
    %c0_i32 = arith.constant 0 : i32
    %c0_i32_0 = arith.constant 0 : i32
    %c0_i32_1 = arith.constant 0 : i32
    return %c0_i32, %c0_i32_0 : i32, i32
  }
  func.func @transform_18(%arg0: i32) -> (i32, i32) {
    %c0_i32 = arith.constant 0 : i32
    %c0_i32_0 = arith.constant 0 : i32
    %c0_i32_1 = arith.constant 0 : i32
    return %c0_i32, %c0_i32_0 : i32, i32
  }
  func.func @transform_19(%arg0: i32) -> (i32, i32) {
    %c0_i32 = arith.constant 0 : i32
    %c0_i32_0 = arith.constant 0 : i32
    %c0_i32_1 = arith.constant 0 : i32
    return %c0_i32, %c0_i32_0 : i32, i32
  }
  func.func @transform_20(%arg0: i32) -> (i32, i32) {
    %c0_i32 = arith.constant 0 : i32
    %c0_i32_0 = arith.constant 0 : i32
    %c0_i32_1 = arith.constant 0 : i32
    return %c0_i32, %c0_i32_0 : i32, i32
  }
  func.func @transform_21(%arg0: i32) -> (i32, i32) {
    %c0_i32 = arith.constant 0 : i32
    %c0_i32_0 = arith.constant 0 : i32
    %c0_i32_1 = arith.constant 0 : i32
    return %c0_i32, %c0_i32_0 : i32, i32
  }
  func.func @transform_22(%arg0: i32) -> (i32, i32) {
    %c0_i32 = arith.constant 0 : i32
    %c0_i32_0 = arith.constant 0 : i32
    %c0_i32_1 = arith.constant 0 : i32
    return %c0_i32, %c0_i32_0 : i32, i32
  }
  func.func @transform_23(%arg0: i32) -> (i32, i32) {
    %c0_i32 = arith.constant 0 : i32
    %c0_i32_0 = arith.constant 0 : i32
    return %arg0, %c0_i32 : i32, i32
  }
}

</mosaic_0001>

<llo_original>
// kernel: tpu_custom_call.1
$region0: #{tpu_custom_call.1}
  #allocation0 [shape = 'u32[]', space=smem, size = 0x4, offset = 0x4, fixed_abs, tag = 'smem constant byte address 0x4 - core index']
  #allocation1 [shape = 'u32[144,128]{1,0:T(1,128)}', space=vmem, size = 0x12000, scoped, tag = 'internal scratch']
  #allocation2 [shape = 'f32[8,128]{1,0:T(8,128)}', space=vmem, size = 0x1000, scoped, tag = 'scratch operand']
  #allocation3 [shape = 'f32[1,1]{1,0:T(1,128)S(1)}', space=vmem, size = 0x200, scoped, tag = 'scoped memory for tpu_custom_call.1']
  %s0 = inlined_call_operand.vmem [shape: f32[9], index: 0, kind: input, shape index: {}]
  %s1 = inlined_call_operand.hbm [shape: f32[8,32], index: 1, kind: input, shape index: {}]
  %s2 = inlined_call_operand.hbm [shape: f32[8,16], index: 2, kind: input, shape index: {}]
  %s3 = inlined_call_operand.hbm [shape: bf16[32,256], index: 3, kind: input, shape index: {}]
  %s4 = inlined_call_operand.hbm [shape: f32[1,256], index: 4, kind: input, shape index: {}]
  %s5 = inlined_call_operand.vmem [shape: bf16[256,256], index: 5, kind: input, shape index: {}]
  %s6 = inlined_call_operand.hbm [shape: f32[1,256], index: 6, kind: input, shape index: {}]
  %s7 = inlined_call_operand.vmem [shape: bf16[256,64], index: 7, kind: input, shape index: {}]
  %s8 = inlined_call_operand.hbm [shape: f32[1,64], index: 8, kind: input, shape index: {}]
  %s9 = inlined_call_operand.hbm [shape: bf16[16,128], index: 9, kind: input, shape index: {}]
  %s10 = inlined_call_operand.hbm [shape: f32[1,128], index: 10, kind: input, shape index: {}]
  %s11 = inlined_call_operand.vmem [shape: bf16[128,128], index: 11, kind: input, shape index: {}]
  %s12 = inlined_call_operand.hbm [shape: f32[1,128], index: 12, kind: input, shape index: {}]
  %s13 = inlined_call_operand.vmem [shape: bf16[128,64], index: 13, kind: input, shape index: {}]
  %s14 = inlined_call_operand.hbm [shape: f32[1,64], index: 14, kind: input, shape index: {}]
  %s15 = inlined_call_operand.vmem [shape: bf16[128,128], index: 15, kind: input, shape index: {}]
  %s16 = inlined_call_operand.hbm [shape: f32[1,128], index: 16, kind: input, shape index: {}]
  %s17 = inlined_call_operand.hbm [shape: bf16[128,128], index: 17, kind: input, shape index: {}]
  %s18 = inlined_call_operand.vmem [shape: f32[1,128], index: 18, kind: input, shape index: {}]
  %s19 = inlined_call_operand.vmem [shape: bf16[128,64], index: 19, kind: input, shape index: {}]
  %s20 = inlined_call_operand.vmem [shape: f32[1,64], index: 20, kind: input, shape index: {}]
  %s21 = inlined_call_operand.vmem [shape: bf16[64,1], index: 21, kind: input, shape index: {}]
  %s22 = inlined_call_operand.<no memory space> [shape: f32[1,1], index: 22, kind: input, shape index: {}]
  %s23 = inlined_call_operand.vmem [shape: f32[8,1], index: 23, kind: output, shape index: {}]
  %s24 = sld [smem:[#allocation0]]
  $region154: #{tpu_custom_call.1} parent=0
    _
  %s26 = ssub.s32 1, %s24
  %s27 = scalar_select 0, %s26, %s24
  %v28 = vstv %s22
  %29 = vst [vmem:[#allocation3] sm:$0x1] %v28
  $region1: #{tpu_custom_call.1} parent=0
    #allocation4 [shape = 'u8[512]{0}', space=smem, size = 0x200, scoped, tag = 'input window, operand 0, single buffered']
    #allocation5 [shape = 's32[1]{0}', space=sflag, size = 0x4, scoped, tag = 'scoped memory for tpu_custom_call.1']
    #allocation6 [shape = 's32[1]{0}', space=sflag, size = 0x4, scoped, tag = 'scoped memory for tpu_custom_call.1']
    #allocation7 [shape = 'u8[4096]{0}', space=vmem, size = 0x1000, scoped, tag = 'input window, operand 1, single buffered']
    #allocation8 [shape = 'u8[4096]{0}', space=vmem, size = 0x1000, scoped, tag = 'input window, operand 2, single buffered']
    #allocation9 [shape = 's32[1]{0}', space=sflag, size = 0x4, scoped, tag = 'scoped memory for tpu_custom_call.1']
    #allocation10 [shape = 'u8[16384]{0}', space=vmem, size = 0x4000, scoped, tag = 'input window, operand 3, single buffered']
    #allocation11 [shape = 'u8[1024]{0}', space=vmem, size = 0x400, scoped, tag = 'input window, operand 4, single buffered']
    #allocation12 [shape = 's32[1]{0}', space=sflag, size = 0x4, scoped, tag = 'scoped memory for tpu_custom_call.1']
    #allocation13 [shape = 'u8[1024]{0}', space=vmem, size = 0x400, scoped, tag = 'input window, operand 6, single buffered']
    #allocation14 [shape = 'u8[512]{0}', space=vmem, size = 0x400, scoped, tag = 'input window, operand 8, single buffered']
    #allocation15 [shape = 's32[1]{0}', space=sflag, size = 0x4, scoped, tag = 'scoped memory for tpu_custom_call.1']
    #allocation16 [shape = 'u8[4096]{0}', space=vmem, size = 0x1000, scoped, tag = 'input window, operand 9, single buffered']
    #allocation17 [shape = 'u8[512]{0}', space=vmem, size = 0x400, scoped, tag = 'input window, operand 10, single buffered']
    #allocation18 [shape = 's32[1]{0}', space=sflag, size = 0x4, scoped, tag = 'scoped memory for tpu_custom_call.1']
    #allocation19 [shape = 'u8[512]{0}', space=vmem, size = 0x400, scoped, tag = 'input window, operand 12, single buffered']
    #allocation20 [shape = 'u8[512]{0}', space=vmem, size = 0x400, scoped, tag = 'input window, operand 14, single buffered']
    #allocation21 [shape = 's32[1]{0}', space=sflag, size = 0x4, scoped, tag = 'scoped memory for tpu_custom_call.1']
    #allocation22 [shape = 'u8[512]{0}', space=vmem, size = 0x400, scoped, tag = 'input window, operand 16, single buffered']
    #allocation23 [shape = 'u8[32768]{0}', space=vmem, size = 0x8000, scoped, tag = 'input window, operand 17, single buffered']
    #allocation24 [shape = 's32[1]{0}', space=sflag, size = 0x4, scoped, tag = 'scoped memory for tpu_custom_call.1']
    %30 = vsyncpa [#allocation6], 0
    %31 = vsyncpa [#allocation5], 0
    %32 = vsyncpa [#allocation9], 0
    %33 = vsyncpa [#allocation12], 0
    %34 = vsyncpa [#allocation15], 0
    %35 = vsyncpa [#allocation18], 0
    %36 = vsyncpa [#allocation21], 0
    %37 = vsyncpa [#allocation24], 0
    // Predicated region
    $region2: #{tpu_custom_call.1} parent=1 // pred_check
      _
    $region3: #{tpu_custom_call.1} parent=1 // pred_check_branch
      %39 = sbr.rel (0) target = $region5
    $region4: #{tpu_custom_call.1} parent=1 // pred_region
      %s41 = ssub.s32 16, 16
      %42 = vsyncadd [#allocation6], %s41
      %s44 = sshll.u32 %s0, 4
      %s45 = int_to_ptr.vmem [resolvable:$true] %s44
      %47 = dma.vmem_to_smem %s45, 16, [#allocation4], [#allocation6]
    $region5: #{tpu_custom_call.1} parent=1 // pred_fallthru
      _
    // Predicated region
    $region6: #{tpu_custom_call.1} parent=1 // pred_check
      _
    $region7: #{tpu_custom_call.1} parent=1 // pred_check_branch
      %49 = sbr.rel (0) target = $region9
    $region8: #{tpu_custom_call.1} parent=1 // pred_region
      %s51 = ssub.s32 128, 128
      %52 = vsyncadd [#allocation5], %s51
      %s54 = sshll.u32 [#allocation7], 4
      %s55 = int_to_ptr.vmem [resolvable:$true] %s54
      %57 = dma.hbm_to_vmem [thread:$0]  %s1, 128, %s55, [#allocation5]
    $region9: #{tpu_custom_call.1} parent=1 // pred_fallthru
      _
    // Predicated region
    $region10: #{tpu_custom_call.1} parent=1 // pred_check
      _
    $region11: #{tpu_custom_call.1} parent=1 // pred_check_branch
      %59 = sbr.rel (0) target = $region13
    $region12: #{tpu_custom_call.1} parent=1 // pred_region
      %s61 = ssub.s32 128, 128
      %62 = vsyncadd [#allocation9], %s61
      %s64 = sshll.u32 [#allocation8], 4
      %s65 = int_to_ptr.vmem [resolvable:$true] %s64
      %67 = dma.hbm_to_vmem [thread:$0]  %s2, 128, %s65, [#allocation9]
    $region13: #{tpu_custom_call.1} parent=1 // pred_fallthru
      _
    // Predicated region
    $region14: #{tpu_custom_call.1} parent=1 // pred_check
      _
    $region15: #{tpu_custom_call.1} parent=1 // pred_check_branch
      %69 = sbr.rel (0) target = $region17
    $region16: #{tpu_custom_call.1} parent=1 // pred_region
      %s71 = ssub.s32 512, 512
      %72 = vsyncadd [#allocation9], %s71
      %s73 = sshll.u32 [#allocation10], 4
      %s74 = int_to_ptr.vmem [resolvable:$true] %s73
      %79 = dma.hbm_to_vmem [thread:$0]  %s3, 512, %s74, [#allocation9], 128, 128, 8
    $region17: #{tpu_custom_call.1} parent=1 // pred_fallthru
      _
    // Predicated region
    $region18: #{tpu_custom_call.1} parent=1 // pred_check
      _
    $region19: #{tpu_custom_call.1} parent=1 // pred_check_branch
      %81 = sbr.rel (0) target = $region21
    $region20: #{tpu_custom_call.1} parent=1 // pred_region
      %s83 = ssub.s32 32, 32
      %84 = vsyncadd [#allocation12], %s83
      %s86 = sshll.u32 [#allocation11], 4
      %s87 = int_to_ptr.vmem [resolvable:$true] %s86
      %89 = dma.hbm_to_vmem [thread:$0]  %s4, 32, %s87, [#allocation12]
    $region21: #{tpu_custom_call.1} parent=1 // pred_fallthru
      _
    // Predicated region
    $region22: #{tpu_custom_call.1} parent=1 // pred_check
      _
    $region23: #{tpu_custom_call.1} parent=1 // pred_check_branch
      %91 = sbr.rel (0) target = $region25
    $region24: #{tpu_custom_call.1} parent=1 // pred_region
      _
    $region25: #{tpu_custom_call.1} parent=1 // pred_fallthru
      _
    // Predicated region
    $region26: #{tpu_custom_call.1} parent=1 // pred_check
      _
    $region27: #{tpu_custom_call.1} parent=1 // pred_check_branch
      %93 = sbr.rel (0) target = $region29
    $region28: #{tpu_custom_call.1} parent=1 // pred_region
      %s95 = ssub.s32 32, 32
      %96 = vsyncadd [#allocation12], %s95
      %s98 = sshll.u32 [#allocation13], 4
      %s99 = int_to_ptr.vmem [resolvable:$true] %s98
      %101 = dma.hbm_to_vmem [thread:$0]  %s6, 32, %s99, [#allocation12]
    $region29: #{tpu_custom_call.1} parent=1 // pred_fallthru
      _
    // Predicated region
    $region30: #{tpu_custom_call.1} parent=1 // pred_check
      _
    $region31: #{tpu_custom_call.1} parent=1 // pred_check_branch
      %103 = sbr.rel (0) target = $region33
    $region32: #{tpu_custom_call.1} parent=1 // pred_region
      _
    $region33: #{tpu_custom_call.1} parent=1 // pred_fallthru
      _
    // Predicated region
    $region34: #{tpu_custom_call.1} parent=1 // pred_check
      _
    $region35: #{tpu_custom_call.1} parent=1 // pred_check_branch
      %105 = sbr.rel (0) target = $region37
    $region36: #{tpu_custom_call.1} parent=1 // pred_region
      %s107 = ssub.s32 16, 16
      %108 = vsyncadd [#allocation15], %s107
      %s110 = sshll.u32 [#allocation14], 4
      %s111 = int_to_ptr.vmem [resolvable:$true] %s110
      %113 = dma.hbm_to_vmem [thread:$0]  %s8, 16, %s111, [#allocation15]
    $region37: #{tpu_custom_call.1} parent=1 // pred_fallthru
      _
    // Predicated region
    $region38: #{tpu_custom_call.1} parent=1 // pred_check
      _
    $region39: #{tpu_custom_call.1} parent=1 // pred_check_branch
      %115 = sbr.rel (0) target = $region41
    $region40: #{tpu_custom_call.1} parent=1 // pred_region
      %s117 = ssub.s32 128, 128
      %118 = vsyncadd [#allocation15], %s117
      %s119 = sshll.u32 [#allocation16], 4
      %s120 = int_to_ptr.vmem [resolvable:$true] %s119
      %125 = dma.hbm_to_vmem [thread:$0]  %s9, 128, %s120, [#allocation15], 64, 64, 4
    $region41: #{tpu_custom_call.1} parent=1 // pred_fallthru
      _
    // Predicated region
    $region42: #{tpu_custom_call.1} parent=1 // pred_check
      _
    $region43: #{tpu_custom_call.1} parent=1 // pred_check_branch
      %127 = sbr.rel (0) target = $region45
    $region44: #{tpu_custom_call.1} parent=1 // pred_region
      %s129 = ssub.s32 16, 16
      %130 = vsyncadd [#allocation18], %s129
      %s132 = sshll.u32 [#allocation17], 4
      %s133 = int_to_ptr.vmem [resolvable:$true] %s132
      %135 = dma.hbm_to_vmem [thread:$0]  %s10, 16, %s133, [#allocation18]
    $region45: #{tpu_custom_call.1} parent=1 // pred_fallthru
      _
    // Predicated region
    $region46: #{tpu_custom_call.1} parent=1 // pred_check
      _
    $region47: #{tpu_custom_call.1} parent=1 // pred_check_branch
      %137 = sbr.rel (0) target = $region49
    $region48: #{tpu_custom_call.1} parent=1 // pred_region
      _
    $region49: #{tpu_custom_call.1} parent=1 // pred_fallthru
      _
    // Predicated region
    $region50: #{tpu_custom_call.1} parent=1 // pred_check
      _
    $region51: #{tpu_custom_call.1} parent=1 // pred_check_branch
      %139 = sbr.rel (0) target = $region53
    $region52: #{tpu_custom_call.1} parent=1 // pred_region
      %s141 = ssub.s32 16, 16
      %142 = vsyncadd [#allocation18], %s141
      %s144 = sshll.u32 [#allocation19], 4
      %s145 = int_to_ptr.vmem [resolvable:$true] %s144
      %147 = dma.hbm_to_vmem [thread:$0]  %s12, 16, %s145, [#allocation18]
    $region53: #{tpu_custom_call.1} parent=1 // pred_fallthru
      _
    // Predicated region
    $region54: #{tpu_custom_call.1} parent=1 // pred_check
      _
    $region55: #{tpu_custom_call.1} parent=1 // pred_check_branch
      %149 = sbr.rel (0) target = $region57
    $region56: #{tpu_custom_call.1} parent=1 // pred_region
      _
    $region57: #{tpu_custom_call.1} parent=1 // pred_fallthru
      _
    // Predicated region
    $region58: #{tpu_custom_call.1} parent=1 // pred_check
      _
    $region59: #{tpu_custom_call.1} parent=1 // pred_check_branch
      %151 = sbr.rel (0) target = $region61
    $region60: #{tpu_custom_call.1} parent=1 // pred_region
      %s153 = ssub.s32 16, 16
      %154 = vsyncadd [#allocation21], %s153
      %s156 = sshll.u32 [#allocation20], 4
      %s157 = int_to_ptr.vmem [resolvable:$true] %s156
      %159 = dma.hbm_to_vmem [thread:$0]  %s14, 16, %s157, [#allocation21]
    $region61: #{tpu_custom_call.1} parent=1 // pred_fallthru
      _
    // Predicated region
    $region62: #{tpu_custom_call.1} parent=1 // pred_check
      _
    $region63: #{tpu_custom_call.1} parent=1 // pred_check_branch
      %161 = sbr.rel (0) target = $region65
    $region64: #{tpu_custom_call.1} parent=1 // pred_region
      _
    $region65: #{tpu_custom_call.1} parent=1 // pred_fallthru
      _
    // Predicated region
    $region66: #{tpu_custom_call.1} parent=1 // pred_check
      _
    $region67: #{tpu_custom_call.1} parent=1 // pred_check_branch
      %163 = sbr.rel (0) target = $region69
    $region68: #{tpu_custom_call.1} parent=1 // pred_region
      %s165 = ssub.s32 16, 16
      %166 = vsyncadd [#allocation21], %s165
      %s168 = sshll.u32 [#allocation22], 4
      %s169 = int_to_ptr.vmem [resolvable:$true] %s168
      %171 = dma.hbm_to_vmem [thread:$0]  %s16, 16, %s169, [#allocation21]
    $region69: #{tpu_custom_call.1} parent=1 // pred_fallthru
      _
    // Predicated region
    $region70: #{tpu_custom_call.1} parent=1 // pred_check
      _
    $region71: #{tpu_custom_call.1} parent=1 // pred_check_branch
      %173 = sbr.rel (0) target = $region73
    $region72: #{tpu_custom_call.1} parent=1 // pred_region
      %s175 = ssub.s32 1024, 1024
      %176 = vsyncadd [#allocation24], %s175
      %s177 = sshll.u32 [#allocation23], 4
      %s178 = int_to_ptr.vmem [resolvable:$true] %s177
      %183 = dma.hbm_to_vmem [thread:$0]  %s17, 1024, %s178, [#allocation24], 64, 64, 4
    $region73: #{tpu_custom_call.1} parent=1 // pred_fallthru
      _
    // Predicated region
    $region74: #{tpu_custom_call.1} parent=1 // pred_check
      _
    $region75: #{tpu_custom_call.1} parent=1 // pred_check_branch
      %185 = sbr.rel (0) target = $region77
    $region76: #{tpu_custom_call.1} parent=1 // pred_region
      _
    $region77: #{tpu_custom_call.1} parent=1 // pred_fallthru
      _
    // Predicated region
    $region78: #{tpu_custom_call.1} parent=1 // pred_check
      _
    $region79: #{tpu_custom_call.1} parent=1 // pred_check_branch
      %187 = sbr.rel (0) target = $region81
    $region80: #{tpu_custom_call.1} parent=1 // pred_region
      _
    $region81: #{tpu_custom_call.1} parent=1 // pred_fallthru
      _
    // Predicated region
    $region82: #{tpu_custom_call.1} parent=1 // pred_check
      _
    $region83: #{tpu_custom_call.1} parent=1 // pred_check_branch
      %189 = sbr.rel (0) target = $region85
    $region84: #{tpu_custom_call.1} parent=1 // pred_region
      _
    $region85: #{tpu_custom_call.1} parent=1 // pred_fallthru
      _
    // Predicated region
    $region86: #{tpu_custom_call.1} parent=1 // pred_check
      _
    $region87: #{tpu_custom_call.1} parent=1 // pred_check_branch
      %191 = sbr.rel (0) target = $region89
    $region88: #{tpu_custom_call.1} parent=1 // pred_region
      _
    $region89: #{tpu_custom_call.1} parent=1 // pred_fallthru
      _
    // Predicated region
    $region90: #{tpu_custom_call.1} parent=1 // pred_check
      _
    $region91: #{tpu_custom_call.1} parent=1 // pred_check_branch
      %193 = sbr.rel (0) target = $region93
    $region92: #{tpu_custom_call.1} parent=1 // pred_region
      _
    $region93: #{tpu_custom_call.1} parent=1 // pred_fallthru
      _
    // Predicated region
    $region94: #{tpu_custom_call.1} parent=1 // pred_check
      _
    $region95: #{tpu_custom_call.1} parent=1 // pred_check_branch
      %195 = sbr.rel (0) target = $region97
    $region96: #{tpu_custom_call.1} parent=1 // pred_region
      %196 = dma.done [#allocation6], 16
    $region97: #{tpu_custom_call.1} parent=1 // pred_fallthru
      _
    // Predicated region
    $region98: #{tpu_custom_call.1} parent=1 // pred_check
      _
    $region99: #{tpu_custom_call.1} parent=1 // pred_check_branch
      %198 = sbr.rel (0) target = $region101
    $region100: #{tpu_custom_call.1} parent=1 // pred_region
      %199 = dma.done [#allocation5], 128
    $region101: #{tpu_custom_call.1} parent=1 // pred_fallthru
      _
    // Predicated region
    $region102: #{tpu_custom_call.1} parent=1 // pred_check
      _
    $region103: #{tpu_custom_call.1} parent=1 // pred_check_branch
      %201 = sbr.rel (0) target = $region105
    $region104: #{tpu_custom_call.1} parent=1 // pred_region
      %202 = dma.done [#allocation9], 128
    $region105: #{tpu_custom_call.1} parent=1 // pred_fallthru
      _
    // Predicated region
    $region106: #{tpu_custom_call.1} parent=1 // pred_check
      _
    $region107: #{tpu_custom_call.1} parent=1 // pred_check_branch
      %204 = sbr.rel (0) target = $region109
    $region108: #{tpu_custom_call.1} parent=1 // pred_region
      %205 = dma.done [#allocation9], 512
    $region109: #{tpu_custom_call.1} parent=1 // pred_fallthru
      _
    // Predicated region
    $region110: #{tpu_custom_call.1} parent=1 // pred_check
      _
    $region111: #{tpu_custom_call.1} parent=1 // pred_check_branch
      %207 = sbr.rel (0) target = $region113
    $region112: #{tpu_custom_call.1} parent=1 // pred_region
      %208 = dma.done [#allocation12], 32
    $region113: #{tpu_custom_call.1} parent=1 // pred_fallthru
      _
    // Predicated region
    $region114: #{tpu_custom_call.1} parent=1 // pred_check
      _
    $region115: #{tpu_custom_call.1} parent=1 // pred_check_branch
      %210 = sbr.rel (0) target = $region117
    $region116: #{tpu_custom_call.1} parent=1 // pred_region
      %211 = dma.done [#allocation12], 32
    $region117: #{tpu_custom_call.1} parent=1 // pred_fallthru
      _
    // Predicated region
    $region118: #{tpu_custom_call.1} parent=1 // pred_check
      _
    $region119: #{tpu_custom_call.1} parent=1 // pred_check_branch
      %213 = sbr.rel (0) target = $region121
    $region120: #{tpu_custom_call.1} parent=1 // pred_region
      %214 = dma.done [#allocation15], 16
    $region121: #{tpu_custom_call.1} parent=1 // pred_fallthru
      _
    // Predicated region
    $region122: #{tpu_custom_call.1} parent=1 // pred_check
      _
    $region123: #{tpu_custom_call.1} parent=1 // pred_check_branch
      %216 = sbr.rel (0) target = $region125
    $region124: #{tpu_custom_call.1} parent=1 // pred_region
      %217 = dma.done [#allocation15], 128
    $region125: #{tpu_custom_call.1} parent=1 // pred_fallthru
      _
    // Predicated region
    $region126: #{tpu_custom_call.1} parent=1 // pred_check
      _
    $region127: #{tpu_custom_call.1} parent=1 // pred_check_branch
      %219 = sbr.rel (0) target = $region129
    $region128: #{tpu_custom_call.1} parent=1 // pred_region
      %220 = dma.done [#allocation18], 16
    $region129: #{tpu_custom_call.1} parent=1 // pred_fallthru
      _
    // Predicated region
    $region130: #{tpu_custom_call.1} parent=1 // pred_check
      _
    $region131: #{tpu_custom_call.1} parent=1 // pred_check_branch
      %222 = sbr.rel (0) target = $region133
    $region132: #{tpu_custom_call.1} parent=1 // pred_region
      %223 = dma.done [#allocation18], 16
    $region133: #{tpu_custom_call.1} parent=1 // pred_fallthru
      _
    // Predicated region
    $region134: #{tpu_custom_call.1} parent=1 // pred_check
      _
    $region135: #{tpu_custom_call.1} parent=1 // pred_check_branch
      %225 = sbr.rel (0) target = $region137
    $region136: #{tpu_custom_call.1} parent=1 // pred_region
      %226 = dma.done [#allocation21], 16
    $region137: #{tpu_custom_call.1} parent=1 // pred_fallthru
      _
    // Predicated region
    $region138: #{tpu_custom_call.1} parent=1 // pred_check
      _
    $region139: #{tpu_custom_call.1} parent=1 // pred_check_branch
      %228 = sbr.rel (0) target = $region141
    $region140: #{tpu_custom_call.1} parent=1 // pred_region
      %229 = dma.done [#allocation21], 16
    $region141: #{tpu_custom_call.1} parent=1 // pred_fallthru
      _
    // Predicated region
    $region142: #{tpu_custom_call.1} parent=1 // pred_check
      _
    $region143: #{tpu_custom_call.1} parent=1 // pred_check_branch
      %231 = sbr.rel (0) target = $region145
    $region144: #{tpu_custom_call.1} parent=1 // pred_region
      %232 = dma.done [#allocation24], 1024
    $region145: #{tpu_custom_call.1} parent=1 // pred_fallthru
      _
    %233 = sfence
    %v235 = vld [vmem:[#allocation7] sm:$0xff]
    %v236 = vpack.c.bf16 %v235, %v235
    %v237 = vld [vmem:[#allocation10] sm:$0xff]
    %v238 = vld [vmem:[#allocation10 + $0x8] sm:$0xff]
    %v239 = vld [vmem:[#allocation10 + $0x10] sm:$0xff]
    %v240 = vld [vmem:[#allocation10 + $0x18] sm:$0xff]
    %v241 = vld [vmem:[#allocation11] sm:$0x3]
    %v243 = vlaneseq
    %v244 = vshrl.u32 %v243, 7
    %v245 = vsub.s32 0, %v244
    %v246 = vrot.slane %v241, %v245
    %v247 = vlaneseq
    %v248 = vshrl.u32 %v247, 7
    %v249 = vsub.s32 1, %v248
    %v250 = vrot.slane %v241, %v249
    %v257 = vunpack.c.l.b16 %v237
    %v258 = vunpack.c.h.b16 %v237
    %v259 = vunpack.c.l.b16 %v238
    %v260 = vunpack.c.h.b16 %v238
    %v261 = vunpack.c.l.b16 %v239
    %v262 = vunpack.c.h.b16 %v239
    %v263 = vunpack.c.l.b16 %v240
    %v264 = vunpack.c.h.b16 %v240
    %v265 = vpack.c.b16 %v259, %v257
    %v266 = vpack.c.b16 %v260, %v258
    %v267 = vpack.c.b16 %v263, %v261
    %v268 = vpack.c.b16 %v264, %v262
    %vm273 = vcmask 261120
    %v275 = vsel %vm273, %v236, 0
    %277 = vmatprep.subr.bf16.mxu0 %v266
    %278 = vmatpush1.bf16.msra.mxu0 %v265
    %279 = vmatprep.subr.bf16.mxu0 %v268
    %280 = vmatpush1.bf16.msra.mxu0 %v267
    %281 = vmatprep.subr.bf16.mxu0 0
    %282 = vmatpush1.bf16.msra.mxu0 0
    %283 = vmatprep.subr.bf16.mxu0 0
    %284 = vmatpush1.bf16.msra.mxu0 0
    %285 = vmatprep.subr.bf16.mxu0 0
    %286 = vmatpush1.bf16.msra.mxu0 0
    %287 = vmatprep.subr.bf16.mxu0 0
    %288 = vmatpush1.bf16.msra.mxu0 0
    %289 = vmatprep.subr.bf16.mxu0 0
    %290 = vmatpush1.bf16.msra.mxu0 0
    %291 = vmatprep.subr.bf16.mxu0 0
    %292 = vmatpush1.bf16.msra.mxu0 0
    %293 = vmatprep.subr.bf16.mxu0 0
    %294 = vmatpush1.bf16.msra.mxu0 0
    %295 = vmatprep.subr.bf16.mxu0 0
    %296 = vmatpush1.bf16.msra.mxu0 0
    %297 = vmatprep.subr.bf16.mxu0 0
    %298 = vmatpush1.bf16.msra.mxu0 0
    %299 = vmatprep.subr.bf16.mxu0 0
    %300 = vmatpush1.bf16.msra.mxu0 0
    %301 = vmatprep.subr.bf16.mxu0 0
    %302 = vmatpush1.bf16.msra.mxu0 0
    %303 = vmatprep.subr.bf16.mxu0 0
    %304 = vmatpush1.bf16.msra.mxu0 0
    %305 = vmatprep.subr.bf16.mxu0 0
    %306 = vmatpush1.bf16.msra.mxu0 0
    %307 = vmatprep.subr.bf16.mxu0 0
    %308 = vmatpush1.bf16.msra.mxu0 0
    %309 = vmatprep.mubr.bf16.mxu0 0
    %310 = vmatmul.mubr.bf16.gmra.mrb[0].mxu0 %v275
    %v311 = vpop.f32.mrb[0].mxu0
    %v312 = vadd.f32 %v246, %v311
    %v313 = vpop.f32.mrb[0].mxu0
    %v314 = vadd.f32 %v250, %v313
    %v315 = vpop.f32.mrb[0].mxu0
    %v316 = vpop.f32.mrb[0].mxu0
    %317 = vdwg.mxu0
    %s318 = sld [smem:[#allocation4]]
    %vm319 = vcmp.ge.f32.partialorder %v312, 0.0
    %vm320 = vcmp.ge.f32.partialorder %v314, 0.0
    %v321 = vstv %s318
    %v322 = vmul.f32 %v321, %v312
    %v323 = vmul.f32 %v321, %v314
    %v324 = vsel %vm319, %v312, %v322
    %v325 = vsel %vm320, %v314, %v323
    %v326 = vpack.c.bf16 %v324, %v324
    %v327 = vpack.c.bf16 %v325, %v325
    %v328 = vld [vmem:[%s5] sm:$0xff]
    %v329 = vld [vmem:[%s5 + $0x8] sm:$0xff]
    %v330 = vld [vmem:[%s5 + $0x10] sm:$0xff]
    %v331 = vld [vmem:[%s5 + $0x18] sm:$0xff]
    %v332 = vld [vmem:[%s5 + $0x20] sm:$0xff]
    %v333 = vld [vmem:[%s5 + $0x28] sm:$0xff]
    %v334 = vld [vmem:[%s5 + $0x30] sm:$0xff]
    %v335 = vld [vmem:[%s5 + $0x38] sm:$0xff]
    %v336 = vld [vmem:[%s5 + $0x40] sm:$0xff]
    %v337 = vld [vmem:[%s5 + $0x48] sm:$0xff]
    %v338 = vld [vmem:[%s5 + $0x50] sm:$0xff]
    %v339 = vld [vmem:[%s5 + $0x58] sm:$0xff]
    %v340 = vld [vmem:[%s5 + $0x60] sm:$0xff]
    %v341 = vld [vmem:[%s5 + $0x68] sm:$0xff]
    %v342 = vld [vmem:[%s5 + $0x70] sm:$0xff]
    %v343 = vld [vmem:[%s5 + $0x78] sm:$0xff]
    %v344 = vld [vmem:[%s5 + $0x80] sm:$0xff]
    %v345 = vld [vmem:[%s5 + $0x88] sm:$0xff]
    %v346 = vld [vmem:[%s5 + $0x90] sm:$0xff]
    %v347 = vld [vmem:[%s5 + $0x98] sm:$0xff]
    %v348 = vld [vmem:[%s5 + $0xa0] sm:$0xff]
    %v349 = vld [vmem:[%s5 + $0xa8] sm:$0xff]
    %v350 = vld [vmem:[%s5 + $0xb0] sm:$0xff]
    %v351 = vld [vmem:[%s5 + $0xb8] sm:$0xff]
    %v352 = vld [vmem:[%s5 + $0xc0] sm:$0xff]
    %v353 = vld [vmem:[%s5 + $0xc8] sm:$0xff]
    %v354 = vld [vmem:[%s5 + $0xd0] sm:$0xff]
    %v355 = vld [vmem:[%s5 + $0xd8] sm:$0xff]
    %v356 = vld [vmem:[%s5 + $0xe0] sm:$0xff]
    %v357 = vld [vmem:[%s5 + $0xe8] sm:$0xff]
    %v358 = vld [vmem:[%s5 + $0xf0] sm:$0xff]
    %v359 = vld [vmem:[%s5 + $0xf8] sm:$0xff]
    %v360 = vld [vmem:[#allocation13] sm:$0x3]
    %v362 = vlaneseq
    %v363 = vshrl.u32 %v362, 7
    %v364 = vsub.s32 0, %v363
    %v365 = vrot.slane %v360, %v364
    %v366 = vlaneseq
    %v367 = vshrl.u32 %v366, 7
    %v368 = vsub.s32 1, %v367
    %v369 = vrot.slane %v360, %v368
    %v404 = vunpack.c.l.b16 %v328
    %v405 = vunpack.c.h.b16 %v328
    %v406 = vunpack.c.l.b16 %v329
    %v407 = vunpack.c.h.b16 %v329
    %v408 = vunpack.c.l.b16 %v330
    %v409 = vunpack.c.h.b16 %v330
    %v410 = vunpack.c.l.b16 %v331
    %v411 = vunpack.c.h.b16 %v331
    %v412 = vunpack.c.l.b16 %v332
    %v413 = vunpack.c.h.b16 %v332
    %v414 = vunpack.c.l.b16 %v333
    %v415 = vunpack.c.h.b16 %v333
    %v416 = vunpack.c.l.b16 %v334
    %v417 = vunpack.c.h.b16 %v334
    %v418 = vunpack.c.l.b16 %v335
    %v419 = vunpack.c.h.b16 %v335
    %v420 = vunpack.c.l.b16 %v336
    %v421 = vunpack.c.h.b16 %v336
    %v422 = vunpack.c.l.b16 %v337
    %v423 = vunpack.c.h.b16 %v337
    %v424 = vunpack.c.l.b16 %v338
    %v425 = vunpack.c.h.b16 %v338
    %v426 = vunpack.c.l.b16 %v339
    %v427 = vunpack.c.h.b16 %v339
    %v428 = vunpack.c.l.b16 %v340
    %v429 = vunpack.c.h.b16 %v340
    %v430 = vunpack.c.l.b16 %v341
    %v431 = vunpack.c.h.b16 %v341
    %v432 = vunpack.c.l.b16 %v342
    %v433 = vunpack.c.h.b16 %v342
    %v434 = vunpack.c.l.b16 %v343
    %v435 = vunpack.c.h.b16 %v343
    %v436 = vunpack.c.l.b16 %v344
    %v437 = vunpack.c.h.b16 %v344
    %v438 = vunpack.c.l.b16 %v345
    %v439 = vunpack.c.h.b16 %v345
    %v440 = vunpack.c.l.b16 %v346
    %v441 = vunpack.c.h.b16 %v346
    %v442 = vunpack.c.l.b16 %v347
    %v443 = vunpack.c.h.b16 %v347
    %v444 = vunpack.c.l.b16 %v348
    %v445 = vunpack.c.h.b16 %v348
    %v446 = vunpack.c.l.b16 %v349
    %v447 = vunpack.c.h.b16 %v349
    %v448 = vunpack.c.l.b16 %v350
    %v449 = vunpack.c.h.b16 %v350
    %v450 = vunpack.c.l.b16 %v351
    %v451 = vunpack.c.h.b16 %v351
    %v452 = vunpack.c.l.b16 %v352
    %v453 = vunpack.c.h.b16 %v352
    %v454 = vunpack.c.l.b16 %v353
    %v455 = vunpack.c.h.b16 %v353
    %v456 = vunpack.c.l.b16 %v354
    %v457 = vunpack.c.h.b16 %v354
    %v458 = vunpack.c.l.b16 %v355
    %v459 = vunpack.c.h.b16 %v355
    %v460 = vunpack.c.l.b16 %v356
    %v461 = vunpack.c.h.b16 %v356
    %v462 = vunpack.c.l.b16 %v357
    %v463 = vunpack.c.h.b16 %v357
    %v464 = vunpack.c.l.b16 %v358
    %v465 = vunpack.c.h.b16 %v358
    %v466 = vunpack.c.l.b16 %v359
    %v467 = vunpack.c.h.b16 %v359
    %v468 = vpack.c.b16 %v406, %v404
    %v469 = vpack.c.b16 %v407, %v405
    %v470 = vpack.c.b16 %v410, %v408
    %v471 = vpack.c.b16 %v411, %v409
    %v472 = vpack.c.b16 %v414, %v412
    %v473 = vpack.c.b16 %v415, %v413
    %v474 = vpack.c.b16 %v418, %v416
    %v475 = vpack.c.b16 %v419, %v417
    %v476 = vpack.c.b16 %v422, %v420
    %v477 = vpack.c.b16 %v423, %v421
    %v478 = vpack.c.b16 %v426, %v424
    %v479 = vpack.c.b16 %v427, %v425
    %v480 = vpack.c.b16 %v430, %v428
    %v481 = vpack.c.b16 %v431, %v429
    %v482 = vpack.c.b16 %v434, %v432
    %v483 = vpack.c.b16 %v435, %v433
    %v484 = vpack.c.b16 %v438, %v436
    %v485 = vpack.c.b16 %v439, %v437
    %v486 = vpack.c.b16 %v442, %v440
    %v487 = vpack.c.b16 %v443, %v441
    %v488 = vpack.c.b16 %v446, %v444
    %v489 = vpack.c.b16 %v447, %v445
    %v490 = vpack.c.b16 %v450, %v448
    %v491 = vpack.c.b16 %v451, %v449
    %v492 = vpack.c.b16 %v454, %v452
    %v493 = vpack.c.b16 %v455, %v453
    %v494 = vpack.c.b16 %v458, %v456
    %v495 = vpack.c.b16 %v459, %v457
    %v496 = vpack.c.b16 %v462, %v460
    %v497 = vpack.c.b16 %v463, %v461
    %v498 = vpack.c.b16 %v466, %v464
    %v499 = vpack.c.b16 %v467, %v465
    %532 = vmatprep.subr.bf16.mxu0 %v469
    %533 = vmatpush1.bf16.msra.mxu0 %v468
    %534 = vmatprep.subr.bf16.mxu0 %v471
    %535 = vmatpush1.bf16.msra.mxu0 %v470
    %536 = vmatprep.subr.bf16.mxu0 %v473
    %537 = vmatpush1.bf16.msra.mxu0 %v472
    %538 = vmatprep.subr.bf16.mxu0 %v475
    %539 = vmatpush1.bf16.msra.mxu0 %v474
    %540 = vmatprep.subr.bf16.mxu0 %v477
    %541 = vmatpush1.bf16.msra.mxu0 %v476
    %542 = vmatprep.subr.bf16.mxu0 %v479
    %543 = vmatpush1.bf16.msra.mxu0 %v478
    %544 = vmatprep.subr.bf16.mxu0 %v481
    %545 = vmatpush1.bf16.msra.mxu0 %v480
    %546 = vmatprep.subr.bf16.mxu0 %v483
    %547 = vmatpush1.bf16.msra.mxu0 %v482
    %548 = vmatprep.subr.bf16.mxu0 %v485
    %549 = vmatpush1.bf16.msra.mxu0 %v484
    %550 = vmatprep.subr.bf16.mxu0 %v487
    %551 = vmatpush1.bf16.msra.mxu0 %v486
    %552 = vmatprep.subr.bf16.mxu0 %v489
    %553 = vmatpush1.bf16.msra.mxu0 %v488
    %554 = vmatprep.subr.bf16.mxu0 %v491
    %555 = vmatpush1.bf16.msra.mxu0 %v490
    %556 = vmatprep.subr.bf16.mxu0 %v493
    %557 = vmatpush1.bf16.msra.mxu0 %v492
    %558 = vmatprep.subr.bf16.mxu0 %v495
    %559 = vmatpush1.bf16.msra.mxu0 %v494
    %560 = vmatprep.subr.bf16.mxu0 %v497
    %561 = vmatpush1.bf16.msra.mxu0 %v496
    %562 = vmatprep.subr.bf16.mxu0 %v499
    %563 = vmatpush1.bf16.msra.mxu0 %v498
    %564 = vmatprep.mubr.bf16.mxu0 %v327
    %565 = vmatmul.mubr.bf16.gmra.mrb[0].mxu0 %v326
    %v566 = vpop.f32.mrb[0].mxu0
    %v567 = vadd.f32 %v365, %v566
    %v568 = vpop.f32.mrb[0].mxu0
    %v569 = vadd.f32 %v369, %v568
    %v570 = vpop.f32.mrb[0].mxu0
    %v571 = vpop.f32.mrb[0].mxu0
    %572 = vdwg.mxu0
    %s573 = sld [smem:[#allocation4 + $0x1]]
    %vm574 = vcmp.ge.f32.partialorder %v567, 0.0
    %vm575 = vcmp.ge.f32.partialorder %v569, 0.0
    %v576 = vstv %s573
    %v577 = vmul.f32 %v576, %v567
    %v578 = vmul.f32 %v576, %v569
    %v579 = vsel %vm574, %v567, %v577
    %v580 = vsel %vm575, %v569, %v578
    %v581 = vpack.c.bf16 %v579, %v579
    %v582 = vpack.c.bf16 %v580, %v580
    %v583 = vld [vmem:[%s7] sm:$0xf]
    %v584 = vld [vmem:[%s7 + $0x4] sm:$0xf]
    %v585 = vld [vmem:[%s7 + $0x8] sm:$0xf]
    %v586 = vld [vmem:[%s7 + $0xc] sm:$0xf]
    %v587 = vld [vmem:[%s7 + $0x10] sm:$0xf]
    %v588 = vld [vmem:[%s7 + $0x14] sm:$0xf]
    %v589 = vld [vmem:[%s7 + $0x18] sm:$0xf]
    %v590 = vld [vmem:[%s7 + $0x1c] sm:$0xf]
    %v591 = vld [vmem:[%s7 + $0x20] sm:$0xf]
    %v592 = vld [vmem:[%s7 + $0x24] sm:$0xf]
    %v593 = vld [vmem:[%s7 + $0x28] sm:$0xf]
    %v594 = vld [vmem:[%s7 + $0x2c] sm:$0xf]
    %v595 = vld [vmem:[%s7 + $0x30] sm:$0xf]
    %v596 = vld [vmem:[%s7 + $0x34] sm:$0xf]
    %v597 = vld [vmem:[%s7 + $0x38] sm:$0xf]
    %v598 = vld [vmem:[%s7 + $0x3c] sm:$0xf]
    %v599 = vld [vmem:[%s7 + $0x40] sm:$0xf]
    %v600 = vld [vmem:[%s7 + $0x44] sm:$0xf]
    %v601 = vld [vmem:[%s7 + $0x48] sm:$0xf]
    %v602 = vld [vmem:[%s7 + $0x4c] sm:$0xf]
    %v603 = vld [vmem:[%s7 + $0x50] sm:$0xf]
    %v604 = vld [vmem:[%s7 + $0x54] sm:$0xf]
    %v605 = vld [vmem:[%s7 + $0x58] sm:$0xf]
    %v606 = vld [vmem:[%s7 + $0x5c] sm:$0xf]
    %v607 = vld [vmem:[%s7 + $0x60] sm:$0xf]
    %v608 = vld [vmem:[%s7 + $0x64] sm:$0xf]
    %v609 = vld [vmem:[%s7 + $0x68] sm:$0xf]
    %v610 = vld [vmem:[%s7 + $0x6c] sm:$0xf]
    %v611 = vld [vmem:[%s7 + $0x70] sm:$0xf]
    %v612 = vld [vmem:[%s7 + $0x74] sm:$0xf]
    %v613 = vld [vmem:[%s7 + $0x78] sm:$0xf]
    %v614 = vld [vmem:[%s7 + $0x7c] sm:$0xf]
    %v615 = vld [vmem:[#allocation14] sm:$0x1]
    %v617 = vlaneseq
    %v618 = vshrl.u32 %v617, 7
    %v619 = vsub.s32 0, %v618
    %v620 = vrot.slane %v615, %v619
    %v654 = vunpack.c.l.b16 %v583
    %v655 = vunpack.c.l.b16 %v584
    %v656 = vunpack.c.l.b16 %v585
    %v657 = vunpack.c.l.b16 %v586
    %v658 = vunpack.c.l.b16 %v587
    %v659 = vunpack.c.l.b16 %v588
    %v660 = vunpack.c.l.b16 %v589
    %v661 = vunpack.c.l.b16 %v590
    %v662 = vunpack.c.l.b16 %v591
    %v663 = vunpack.c.l.b16 %v592
    %v664 = vunpack.c.l.b16 %v593
    %v665 = vunpack.c.l.b16 %v594
    %v666 = vunpack.c.l.b16 %v595
    %v667 = vunpack.c.l.b16 %v596
    %v668 = vunpack.c.l.b16 %v597
    %v669 = vunpack.c.l.b16 %v598
    %v670 = vunpack.c.l.b16 %v599
    %v671 = vunpack.c.l.b16 %v600
    %v672 = vunpack.c.l.b16 %v601
    %v673 = vunpack.c.l.b16 %v602
    %v674 = vunpack.c.l.b16 %v603
    %v675 = vunpack.c.l.b16 %v604
    %v676 = vunpack.c.l.b16 %v605
    %v677 = vunpack.c.l.b16 %v606
    %v678 = vunpack.c.l.b16 %v607
    %v679 = vunpack.c.l.b16 %v608
    %v680 = vunpack.c.l.b16 %v609
    %v681 = vunpack.c.l.b16 %v610
    %v682 = vunpack.c.l.b16 %v611
    %v683 = vunpack.c.l.b16 %v612
    %v684 = vunpack.c.l.b16 %v613
    %v685 = vunpack.c.l.b16 %v614
    %v686 = vpack.c.b16 %v655, %v654
    %v687 = vpack.c.b16 %v657, %v656
    %v688 = vpack.c.b16 %v659, %v658
    %v689 = vpack.c.b16 %v661, %v660
    %v690 = vpack.c.b16 %v663, %v662
    %v691 = vpack.c.b16 %v665, %v664
    %v692 = vpack.c.b16 %v667, %v666
    %v693 = vpack.c.b16 %v669, %v668
    %v694 = vpack.c.b16 %v671, %v670
    %v695 = vpack.c.b16 %v673, %v672
    %v696 = vpack.c.b16 %v675, %v674
    %v697 = vpack.c.b16 %v677, %v676
    %v698 = vpack.c.b16 %v679, %v678
    %v699 = vpack.c.b16 %v681, %v680
    %v700 = vpack.c.b16 %v683, %v682
    %v701 = vpack.c.b16 %v685, %v684
    %718 = vmatprep.subr.bf16.mxu0 0
    %719 = vmatpush1.bf16.msra.mxu0 %v686
    %720 = vmatprep.subr.bf16.mxu0 0
    %721 = vmatpush1.bf16.msra.mxu0 %v687
    %722 = vmatprep.subr.bf16.mxu0 0
    %723 = vmatpush1.bf16.msra.mxu0 %v688
    %724 = vmatprep.subr.bf16.mxu0 0
    %725 = vmatpush1.bf16.msra.mxu0 %v689
    %726 = vmatprep.subr.bf16.mxu0 0
    %727 = vmatpush1.bf16.msra.mxu0 %v690
    %728 = vmatprep.subr.bf16.mxu0 0
    %729 = vmatpush1.bf16.msra.mxu0 %v691
    %730 = vmatprep.subr.bf16.mxu0 0
    %731 = vmatpush1.bf16.msra.mxu0 %v692
    %732 = vmatprep.subr.bf16.mxu0 0
    %733 = vmatpush1.bf16.msra.mxu0 %v693
    %734 = vmatprep.subr.bf16.mxu0 0
    %735 = vmatpush1.bf16.msra.mxu0 %v694
    %736 = vmatprep.subr.bf16.mxu0 0
    %737 = vmatpush1.bf16.msra.mxu0 %v695
    %738 = vmatprep.subr.bf16.mxu0 0
    %739 = vmatpush1.bf16.msra.mxu0 %v696
    %740 = vmatprep.subr.bf16.mxu0 0
    %741 = vmatpush1.bf16.msra.mxu0 %v697
    %742 = vmatprep.subr.bf16.mxu0 0
    %743 = vmatpush1.bf16.msra.mxu0 %v698
    %744 = vmatprep.subr.bf16.mxu0 0
    %745 = vmatpush1.bf16.msra.mxu0 %v699
    %746 = vmatprep.subr.bf16.mxu0 0
    %747 = vmatpush1.bf16.msra.mxu0 %v700
    %748 = vmatprep.subr.bf16.mxu0 0
    %749 = vmatpush1.bf16.msra.mxu0 %v701
    %750 = vmatprep.mubr.bf16.mxu0 %v582
    %751 = vmatmul.mubr.bf16.gmra.mrb[0].mxu0 %v581
    %v752 = vpop.f32.mrb[0].mxu0
    %v753 = vadd.f32 %v620, %v752
    %v754 = vpop.f32.mrb[0].mxu0
    %v755 = vpop.f32.mrb[0].mxu0
    %v756 = vpop.f32.mrb[0].mxu0
    %757 = vdwg.mxu0
    %s758 = sld [smem:[#allocation4 + $0x2]]
    %vm759 = vcmp.ge.f32.partialorder %v753, 0.0
    %v760 = vstv %s758
    %v761 = vmul.f32 %v760, %v753
    %v762 = vsel %vm759, %v753, %v761
    %v763 = vld [vmem:[#allocation8] sm:$0xff]
    %v764 = vpack.c.bf16 %v763, %v763
    %v765 = vld [vmem:[#allocation16] sm:$0xf]
    %v766 = vld [vmem:[#allocation16 + $0x4] sm:$0xf]
    %v767 = vld [vmem:[#allocation17] sm:$0x1]
    %v769 = vlaneseq
    %v770 = vshrl.u32 %v769, 7
    %v771 = vsub.s32 0, %v770
    %v772 = vrot.slane %v767, %v771
    %v776 = vunpack.c.l.b16 %v765
    %v777 = vunpack.c.l.b16 %v766
    %v778 = vpack.c.b16 %v777, %v776
    %vm780 = vcmask 130048
    %v782 = vsel %vm780, %v764, 0
    %784 = vmatprep.subr.bf16.mxu0 0
    %785 = vmatpush1.bf16.msra.mxu0 %v778
    %786 = vmatprep.subr.bf16.mxu0 0
    %787 = vmatpush1.bf16.msra.mxu0 0
    %788 = vmatprep.subr.bf16.mxu0 0
    %789 = vmatpush1.bf16.msra.mxu0 0
    %790 = vmatprep.subr.bf16.mxu0 0
    %791 = vmatpush1.bf16.msra.mxu0 0
    %792 = vmatprep.subr.bf16.mxu0 0
    %793 = vmatpush1.bf16.msra.mxu0 0
    %794 = vmatprep.subr.bf16.mxu0 0
    %795 = vmatpush1.bf16.msra.mxu0 0
    %796 = vmatprep.subr.bf16.mxu0 0
    %797 = vmatpush1.bf16.msra.mxu0 0
    %798 = vmatprep.subr.bf16.mxu0 0
    %799 = vmatpush1.bf16.msra.mxu0 0
    %800 = vmatprep.subr.bf16.mxu0 0
    %801 = vmatpush1.bf16.msra.mxu0 0
    %802 = vmatprep.subr.bf16.mxu0 0
    %803 = vmatpush1.bf16.msra.mxu0 0
    %804 = vmatprep.subr.bf16.mxu0 0
    %805 = vmatpush1.bf16.msra.mxu0 0
    %806 = vmatprep.subr.bf16.mxu0 0
    %807 = vmatpush1.bf16.msra.mxu0 0
    %808 = vmatprep.subr.bf16.mxu0 0
    %809 = vmatpush1.bf16.msra.mxu0 0
    %810 = vmatprep.subr.bf16.mxu0 0
    %811 = vmatpush1.bf16.msra.mxu0 0
    %812 = vmatprep.subr.bf16.mxu0 0
    %813 = vmatpush1.bf16.msra.mxu0 0
    %814 = vmatprep.subr.bf16.mxu0 0
    %815 = vmatpush1.bf16.msra.mxu0 0
    %816 = vmatprep.mubr.bf16.mxu0 0
    %817 = vmatmul.mubr.bf16.gmra.mrb[0].mxu0 %v782
    %v818 = vpop.f32.mrb[0].mxu0
    %v819 = vadd.f32 %v772, %v818
    %v820 = vpop.f32.mrb[0].mxu0
    %v821 = vpop.f32.mrb[0].mxu0
    %v822 = vpop.f32.mrb[0].mxu0
    %823 = vdwg.mxu0
    %s824 = sld [smem:[#allocation4 + $0x3]]
    %vm825 = vcmp.ge.f32.partialorder %v819, 0.0
    %v826 = vstv %s824
    %v827 = vmul.f32 %v826, %v819
    %v828 = vsel %vm825, %v819, %v827
    %v829 = vpack.c.bf16 %v828, %v828
    %v830 = vld [vmem:[%s11] sm:$0xf]
    %v831 = vld [vmem:[%s11 + $0x4] sm:$0xf]
    %v832 = vld [vmem:[%s11 + $0x8] sm:$0xf]
    %v833 = vld [vmem:[%s11 + $0xc] sm:$0xf]
    %v834 = vld [vmem:[%s11 + $0x10] sm:$0xf]
    %v835 = vld [vmem:[%s11 + $0x14] sm:$0xf]
    %v836 = vld [vmem:[%s11 + $0x18] sm:$0xf]
    %v837 = vld [vmem:[%s11 + $0x1c] sm:$0xf]
    %v838 = vld [vmem:[%s11 + $0x20] sm:$0xf]
    %v839 = vld [vmem:[%s11 + $0x24] sm:$0xf]
    %v840 = vld [vmem:[%s11 + $0x28] sm:$0xf]
    %v841 = vld [vmem:[%s11 + $0x2c] sm:$0xf]
    %v842 = vld [vmem:[%s11 + $0x30] sm:$0xf]
    %v843 = vld [vmem:[%s11 + $0x34] sm:$0xf]
    %v844 = vld [vmem:[%s11 + $0x38] sm:$0xf]
    %v845 = vld [vmem:[%s11 + $0x3c] sm:$0xf]
    %v846 = vld [vmem:[#allocation19] sm:$0x1]
    %v848 = vlaneseq
    %v849 = vshrl.u32 %v848, 7
    %v850 = vsub.s32 0, %v849
    %v851 = vrot.slane %v846, %v850
    %v869 = vunpack.c.l.b16 %v830
    %v870 = vunpack.c.l.b16 %v831
    %v871 = vunpack.c.l.b16 %v832
    %v872 = vunpack.c.l.b16 %v833
    %v873 = vunpack.c.l.b16 %v834
    %v874 = vunpack.c.l.b16 %v835
    %v875 = vunpack.c.l.b16 %v836
    %v876 = vunpack.c.l.b16 %v837
    %v877 = vunpack.c.l.b16 %v838
    %v878 = vunpack.c.l.b16 %v839
    %v879 = vunpack.c.l.b16 %v840
    %v880 = vunpack.c.l.b16 %v841
    %v881 = vunpack.c.l.b16 %v842
    %v882 = vunpack.c.l.b16 %v843
    %v883 = vunpack.c.l.b16 %v844
    %v884 = vunpack.c.l.b16 %v845
    %v885 = vpack.c.b16 %v870, %v869
    %v886 = vpack.c.b16 %v872, %v871
    %v887 = vpack.c.b16 %v874, %v873
    %v888 = vpack.c.b16 %v876, %v875
    %v889 = vpack.c.b16 %v878, %v877
    %v890 = vpack.c.b16 %v880, %v879
    %v891 = vpack.c.b16 %v882, %v881
    %v892 = vpack.c.b16 %v884, %v883
    %901 = vmatprep.subr.bf16.mxu0 0
    %902 = vmatpush1.bf16.msra.mxu0 %v885
    %903 = vmatprep.subr.bf16.mxu0 0
    %904 = vmatpush1.bf16.msra.mxu0 %v886
    %905 = vmatprep.subr.bf16.mxu0 0
    %906 = vmatpush1.bf16.msra.mxu0 %v887
    %907 = vmatprep.subr.bf16.mxu0 0
    %908 = vmatpush1.bf16.msra.mxu0 %v888
    %909 = vmatprep.subr.bf16.mxu0 0
    %910 = vmatpush1.bf16.msra.mxu0 %v889
    %911 = vmatprep.subr.bf16.mxu0 0
    %912 = vmatpush1.bf16.msra.mxu0 %v890
    %913 = vmatprep.subr.bf16.mxu0 0
    %914 = vmatpush1.bf16.msra.mxu0 %v891
    %915 = vmatprep.subr.bf16.mxu0 0
    %916 = vmatpush1.bf16.msra.mxu0 %v892
    %917 = vmatprep.subr.bf16.mxu0 0
    %918 = vmatpush1.bf16.msra.mxu0 0
    %919 = vmatprep.subr.bf16.mxu0 0
    %920 = vmatpush1.bf16.msra.mxu0 0
    %921 = vmatprep.subr.bf16.mxu0 0
    %922 = vmatpush1.bf16.msra.mxu0 0
    %923 = vmatprep.subr.bf16.mxu0 0
    %924 = vmatpush1.bf16.msra.mxu0 0
    %925 = vmatprep.subr.bf16.mxu0 0
    %926 = vmatpush1.bf16.msra.mxu0 0
    %927 = vmatprep.subr.bf16.mxu0 0
    %928 = vmatpush1.bf16.msra.mxu0 0
    %929 = vmatprep.subr.bf16.mxu0 0
    %930 = vmatpush1.bf16.msra.mxu0 0
    %931 = vmatprep.subr.bf16.mxu0 0
    %932 = vmatpush1.bf16.msra.mxu0 0
    %933 = vmatprep.mubr.bf16.mxu0 0
    %934 = vmatmul.mubr.bf16.gmra.mrb[0].mxu0 %v829
    %v935 = vpop.f32.mrb[0].mxu0
    %v936 = vadd.f32 %v851, %v935
    %v937 = vpop.f32.mrb[0].mxu0
    %v938 = vpop.f32.mrb[0].mxu0
    %v939 = vpop.f32.mrb[0].mxu0
    %940 = vdwg.mxu0
    %s941 = sld [smem:[#allocation4 + $0x4]]
    %vm942 = vcmp.ge.f32.partialorder %v936, 0.0
    %v943 = vstv %s941
    %v944 = vmul.f32 %v943, %v936
    %v945 = vsel %vm942, %v936, %v944
    %v946 = vpack.c.bf16 %v945, %v945
    %v947 = vld [vmem:[%s13] sm:$0xf]
    %v948 = vld [vmem:[%s13 + $0x4] sm:$0xf]
    %v949 = vld [vmem:[%s13 + $0x8] sm:$0xf]
    %v950 = vld [vmem:[%s13 + $0xc] sm:$0xf]
    %v951 = vld [vmem:[%s13 + $0x10] sm:$0xf]
    %v952 = vld [vmem:[%s13 + $0x14] sm:$0xf]
    %v953 = vld [vmem:[%s13 + $0x18] sm:$0xf]
    %v954 = vld [vmem:[%s13 + $0x1c] sm:$0xf]
    %v955 = vld [vmem:[%s13 + $0x20] sm:$0xf]
    %v956 = vld [vmem:[%s13 + $0x24] sm:$0xf]
    %v957 = vld [vmem:[%s13 + $0x28] sm:$0xf]
    %v958 = vld [vmem:[%s13 + $0x2c] sm:$0xf]
    %v959 = vld [vmem:[%s13 + $0x30] sm:$0xf]
    %v960 = vld [vmem:[%s13 + $0x34] sm:$0xf]
    %v961 = vld [vmem:[%s13 + $0x38] sm:$0xf]
    %v962 = vld [vmem:[%s13 + $0x3c] sm:$0xf]
    %v963 = vld [vmem:[#allocation20] sm:$0x1]
    %v965 = vlaneseq
    %v966 = vshrl.u32 %v965, 7
    %v967 = vsub.s32 0, %v966
    %v968 = vrot.slane %v963, %v967
    %v986 = vunpack.c.l.b16 %v947
    %v987 = vunpack.c.l.b16 %v948
    %v988 = vunpack.c.l.b16 %v949
    %v989 = vunpack.c.l.b16 %v950
    %v990 = vunpack.c.l.b16 %v951
    %v991 = vunpack.c.l.b16 %v952
    %v992 = vunpack.c.l.b16 %v953
    %v993 = vunpack.c.l.b16 %v954
    %v994 = vunpack.c.l.b16 %v955
    %v995 = vunpack.c.l.b16 %v956
    %v996 = vunpack.c.l.b16 %v957
    %v997 = vunpack.c.l.b16 %v958
    %v998 = vunpack.c.l.b16 %v959
    %v999 = vunpack.c.l.b16 %v960
    %v1000 = vunpack.c.l.b16 %v961
    %v1001 = vunpack.c.l.b16 %v962
    %v1002 = vpack.c.b16 %v987, %v986
    %v1003 = vpack.c.b16 %v989, %v988
    %v1004 = vpack.c.b16 %v991, %v990
    %v1005 = vpack.c.b16 %v993, %v992
    %v1006 = vpack.c.b16 %v995, %v994
    %v1007 = vpack.c.b16 %v997, %v996
    %v1008 = vpack.c.b16 %v999, %v998
    %v1009 = vpack.c.b16 %v1001, %v1000
    %1018 = vmatprep.subr.bf16.mxu0 0
    %1019 = vmatpush1.bf16.msra.mxu0 %v1002
    %1020 = vmatprep.subr.bf16.mxu0 0
    %1021 = vmatpush1.bf16.msra.mxu0 %v1003
    %1022 = vmatprep.subr.bf16.mxu0 0
    %1023 = vmatpush1.bf16.msra.mxu0 %v1004
    %1024 = vmatprep.subr.bf16.mxu0 0
    %1025 = vmatpush1.bf16.msra.mxu0 %v1005
    %1026 = vmatprep.subr.bf16.mxu0 0
    %1027 = vmatpush1.bf16.msra.mxu0 %v1006
    %1028 = vmatprep.subr.bf16.mxu0 0
    %1029 = vmatpush1.bf16.msra.mxu0 %v1007
    %1030 = vmatprep.subr.bf16.mxu0 0
    %1031 = vmatpush1.bf16.msra.mxu0 %v1008
    %1032 = vmatprep.subr.bf16.mxu0 0
    %1033 = vmatpush1.bf16.msra.mxu0 %v1009
    %1034 = vmatprep.subr.bf16.mxu0 0
    %1035 = vmatpush1.bf16.msra.mxu0 0
    %1036 = vmatprep.subr.bf16.mxu0 0
    %1037 = vmatpush1.bf16.msra.mxu0 0
    %1038 = vmatprep.subr.bf16.mxu0 0
    %1039 = vmatpush1.bf16.msra.mxu0 0
    %1040 = vmatprep.subr.bf16.mxu0 0
    %1041 = vmatpush1.bf16.msra.mxu0 0
    %1042 = vmatprep.subr.bf16.mxu0 0
    %1043 = vmatpush1.bf16.msra.mxu0 0
    %1044 = vmatprep.subr.bf16.mxu0 0
    %1045 = vmatpush1.bf16.msra.mxu0 0
    %1046 = vmatprep.subr.bf16.mxu0 0
    %1047 = vmatpush1.bf16.msra.mxu0 0
    %1048 = vmatprep.subr.bf16.mxu0 0
    %1049 = vmatpush1.bf16.msra.mxu0 0
    %1050 = vmatprep.mubr.bf16.mxu0 0
    %1051 = vmatmul.mubr.bf16.gmra.mrb[0].mxu0 %v946
    %v1052 = vpop.f32.mrb[0].mxu0
    %v1053 = vadd.f32 %v968, %v1052
    %v1054 = vpop.f32.mrb[0].mxu0
    %v1055 = vpop.f32.mrb[0].mxu0
    %v1056 = vpop.f32.mrb[0].mxu0
    %1057 = vdwg.mxu0
    %s1058 = sld [smem:[#allocation4 + $0x5]]
    %vm1059 = vcmp.ge.f32.partialorder %v1053, 0.0
    %v1060 = vstv %s1058
    %v1061 = vmul.f32 %v1060, %v1053
    %v1062 = vsel %vm1059, %v1053, %v1061
    %vm1063 = vcmask 523264
    %1064 = vst.msk [vmem:[#allocation2] sm:$0xff] %vm1063, %v762
    %1066 = vrot.lane.b32.xlu0 %v1062, 64
    %v1067 = vpop.permute.xlu0 %1066
    %vm1069 = vcmask 1048064
    %1070 = vst.msk [vmem:[#allocation2] sm:$0xff] %vm1069, %v1067
    %v1071 = vld [vmem:[#allocation2] sm:$0xff]
    %v1072 = vpack.c.bf16 %v1071, %v1071
    %v1073 = vld [vmem:[%s15] sm:$0xf]
    %v1074 = vld [vmem:[%s15 + $0x4] sm:$0xf]
    %v1075 = vld [vmem:[%s15 + $0x8] sm:$0xf]
    %v1076 = vld [vmem:[%s15 + $0xc] sm:$0xf]
    %v1077 = vld [vmem:[%s15 + $0x10] sm:$0xf]
    %v1078 = vld [vmem:[%s15 + $0x14] sm:$0xf]
    %v1079 = vld [vmem:[%s15 + $0x18] sm:$0xf]
    %v1080 = vld [vmem:[%s15 + $0x1c] sm:$0xf]
    %v1081 = vld [vmem:[%s15 + $0x20] sm:$0xf]
    %v1082 = vld [vmem:[%s15 + $0x24] sm:$0xf]
    %v1083 = vld [vmem:[%s15 + $0x28] sm:$0xf]
    %v1084 = vld [vmem:[%s15 + $0x2c] sm:$0xf]
    %v1085 = vld [vmem:[%s15 + $0x30] sm:$0xf]
    %v1086 = vld [vmem:[%s15 + $0x34] sm:$0xf]
    %v1087 = vld [vmem:[%s15 + $0x38] sm:$0xf]
    %v1088 = vld [vmem:[%s15 + $0x3c] sm:$0xf]
    %v1089 = vld [vmem:[#allocation22] sm:$0x1]
    %v1091 = vlaneseq
    %v1092 = vshrl.u32 %v1091, 7
    %v1093 = vsub.s32 0, %v1092
    %v1094 = vrot.slane %v1089, %v1093
    %v1112 = vunpack.c.l.b16 %v1073
    %v1113 = vunpack.c.l.b16 %v1074
    %v1114 = vunpack.c.l.b16 %v1075
    %v1115 = vunpack.c.l.b16 %v1076
    %v1116 = vunpack.c.l.b16 %v1077
    %v1117 = vunpack.c.l.b16 %v1078
    %v1118 = vunpack.c.l.b16 %v1079
    %v1119 = vunpack.c.l.b16 %v1080
    %v1120 = vunpack.c.l.b16 %v1081
    %v1121 = vunpack.c.l.b16 %v1082
    %v1122 = vunpack.c.l.b16 %v1083
    %v1123 = vunpack.c.l.b16 %v1084
    %v1124 = vunpack.c.l.b16 %v1085
    %v1125 = vunpack.c.l.b16 %v1086
    %v1126 = vunpack.c.l.b16 %v1087
    %v1127 = vunpack.c.l.b16 %v1088
    %v1128 = vpack.c.b16 %v1113, %v1112
    %v1129 = vpack.c.b16 %v1115, %v1114
    %v1130 = vpack.c.b16 %v1117, %v1116
    %v1131 = vpack.c.b16 %v1119, %v1118
    %v1132 = vpack.c.b16 %v1121, %v1120
    %v1133 = vpack.c.b16 %v1123, %v1122
    %v1134 = vpack.c.b16 %v1125, %v1124
    %v1135 = vpack.c.b16 %v1127, %v1126
    %1144 = vmatprep.subr.bf16.mxu0 0
    %1145 = vmatpush1.bf16.msra.mxu0 %v1128
    %1146 = vmatprep.subr.bf16.mxu0 0
    %1147 = vmatpush1.bf16.msra.mxu0 %v1129
    %1148 = vmatprep.subr.bf16.mxu0 0
    %1149 = vmatpush1.bf16.msra.mxu0 %v1130
    %1150 = vmatprep.subr.bf16.mxu0 0
    %1151 = vmatpush1.bf16.msra.mxu0 %v1131
    %1152 = vmatprep.subr.bf16.mxu0 0
    %1153 = vmatpush1.bf16.msra.mxu0 %v1132
    %1154 = vmatprep.subr.bf16.mxu0 0
    %1155 = vmatpush1.bf16.msra.mxu0 %v1133
    %1156 = vmatprep.subr.bf16.mxu0 0
    %1157 = vmatpush1.bf16.msra.mxu0 %v1134
    %1158 = vmatprep.subr.bf16.mxu0 0
    %1159 = vmatpush1.bf16.msra.mxu0 %v1135
    %1160 = vmatprep.subr.bf16.mxu0 0
    %1161 = vmatpush1.bf16.msra.mxu0 0
    %1162 = vmatprep.subr.bf16.mxu0 0
    %1163 = vmatpush1.bf16.msra.mxu0 0
    %1164 = vmatprep.subr.bf16.mxu0 0
    %1165 = vmatpush1.bf16.msra.mxu0 0
    %1166 = vmatprep.subr.bf16.mxu0 0
    %1167 = vmatpush1.bf16.msra.mxu0 0
    %1168 = vmatprep.subr.bf16.mxu0 0
    %1169 = vmatpush1.bf16.msra.mxu0 0
    %1170 = vmatprep.subr.bf16.mxu0 0
    %1171 = vmatpush1.bf16.msra.mxu0 0
    %1172 = vmatprep.subr.bf16.mxu0 0
    %1173 = vmatpush1.bf16.msra.mxu0 0
    %1174 = vmatprep.subr.bf16.mxu0 0
    %1175 = vmatpush1.bf16.msra.mxu0 0
    %1176 = vmatprep.mubr.bf16.mxu0 0
    %1177 = vmatmul.mubr.bf16.gmra.mrb[0].mxu0 %v1072
    %v1178 = vpop.f32.mrb[0].mxu0
    %v1179 = vadd.f32 %v1094, %v1178
    %v1180 = vpop.f32.mrb[0].mxu0
    %v1181 = vpop.f32.mrb[0].mxu0
    %v1182 = vpop.f32.mrb[0].mxu0
    %1183 = vdwg.mxu0
    %s1184 = sld [smem:[#allocation4 + $0x6]]
    %vm1185 = vcmp.ge.f32.partialorder %v1179, 0.0
    %v1186 = vstv %s1184
    %v1187 = vmul.f32 %v1186, %v1179
    %v1188 = vsel %vm1185, %v1179, %v1187
    %v1189 = vpack.c.bf16 %v1188, %v1188
    %v1190 = vld [vmem:[#allocation23] sm:$0xf]
    %v1191 = vld [vmem:[#allocation23 + $0x4] sm:$0xf]
    %v1192 = vld [vmem:[#allocation23 + $0x8] sm:$0xf]
    %v1193 = vld [vmem:[#allocation23 + $0xc] sm:$0xf]
    %v1194 = vld [vmem:[#allocation23 + $0x10] sm:$0xf]
    %v1195 = vld [vmem:[#allocation23 + $0x14] sm:$0xf]
    %v1196 = vld [vmem:[#allocation23 + $0x18] sm:$0xf]
    %v1197 = vld [vmem:[#allocation23 + $0x1c] sm:$0xf]
    %v1198 = vld [vmem:[#allocation23 + $0x20] sm:$0xf]
    %v1199 = vld [vmem:[#allocation23 + $0x24] sm:$0xf]
    %v1200 = vld [vmem:[#allocation23 + $0x28] sm:$0xf]
    %v1201 = vld [vmem:[#allocation23 + $0x2c] sm:$0xf]
    %v1202 = vld [vmem:[#allocation23 + $0x30] sm:$0xf]
    %v1203 = vld [vmem:[#allocation23 + $0x34] sm:$0xf]
    %v1204 = vld [vmem:[#allocation23 + $0x38] sm:$0xf]
    %v1205 = vld [vmem:[#allocation23 + $0x3c] sm:$0xf]
    %v1206 = vld [vmem:[%s18] sm:$0x1]
    %v1208 = vlaneseq
    %v1209 = vshrl.u32 %v1208, 7
    %v1210 = vsub.s32 0, %v1209
    %v1211 = vrot.slane %v1206, %v1210
    %v1229 = vunpack.c.l.b16 %v1190
    %v1230 = vunpack.c.l.b16 %v1191
    %v1231 = vunpack.c.l.b16 %v1192
    %v1232 = vunpack.c.l.b16 %v1193
    %v1233 = vunpack.c.l.b16 %v1194
    %v1234 = vunpack.c.l.b16 %v1195
    %v1235 = vunpack.c.l.b16 %v1196
    %v1236 = vunpack.c.l.b16 %v1197
    %v1237 = vunpack.c.l.b16 %v1198
    %v1238 = vunpack.c.l.b16 %v1199
    %v1239 = vunpack.c.l.b16 %v1200
    %v1240 = vunpack.c.l.b16 %v1201
    %v1241 = vunpack.c.l.b16 %v1202
    %v1242 = vunpack.c.l.b16 %v1203
    %v1243 = vunpack.c.l.b16 %v1204
    %v1244 = vunpack.c.l.b16 %v1205
    %v1245 = vpack.c.b16 %v1230, %v1229
    %v1246 = vpack.c.b16 %v1232, %v1231
    %v1247 = vpack.c.b16 %v1234, %v1233
    %v1248 = vpack.c.b16 %v1236, %v1235
    %v1249 = vpack.c.b16 %v1238, %v1237
    %v1250 = vpack.c.b16 %v1240, %v1239
    %v1251 = vpack.c.b16 %v1242, %v1241
    %v1252 = vpack.c.b16 %v1244, %v1243
    %1261 = vmatprep.subr.bf16.mxu0 0
    %1262 = vmatpush1.bf16.msra.mxu0 %v1245
    %1263 = vmatprep.subr.bf16.mxu0 0
    %1264 = vmatpush1.bf16.msra.mxu0 %v1246
    %1265 = vmatprep.subr.bf16.mxu0 0
    %1266 = vmatpush1.bf16.msra.mxu0 %v1247
    %1267 = vmatprep.subr.bf16.mxu0 0
    %1268 = vmatpush1.bf16.msra.mxu0 %v1248
    %1269 = vmatprep.subr.bf16.mxu0 0
    %1270 = vmatpush1.bf16.msra.mxu0 %v1249
    %1271 = vmatprep.subr.bf16.mxu0 0
    %1272 = vmatpush1.bf16.msra.mxu0 %v1250
    %1273 = vmatprep.subr.bf16.mxu0 0
    %1274 = vmatpush1.bf16.msra.mxu0 %v1251
    %1275 = vmatprep.subr.bf16.mxu0 0
    %1276 = vmatpush1.bf16.msra.mxu0 %v1252
    %1277 = vmatprep.subr.bf16.mxu0 0
    %1278 = vmatpush1.bf16.msra.mxu0 0
    %1279 = vmatprep.subr.bf16.mxu0 0
    %1280 = vmatpush1.bf16.msra.mxu0 0
    %1281 = vmatprep.subr.bf16.mxu0 0
    %1282 = vmatpush1.bf16.msra.mxu0 0
    %1283 = vmatprep.subr.bf16.mxu0 0
    %1284 = vmatpush1.bf16.msra.mxu0 0
    %1285 = vmatprep.subr.bf16.mxu0 0
    %1286 = vmatpush1.bf16.msra.mxu0 0
    %1287 = vmatprep.subr.bf16.mxu0 0
    %1288 = vmatpush1.bf16.msra.mxu0 0
    %1289 = vmatprep.subr.bf16.mxu0 0
    %1290 = vmatpush1.bf16.msra.mxu0 0
    %1291 = vmatprep.subr.bf16.mxu0 0
    %1292 = vmatpush1.bf16.msra.mxu0 0
    %1293 = vmatprep.mubr.bf16.mxu0 0
    %1294 = vmatmul.mubr.bf16.gmra.mrb[0].mxu0 %v1189
    %v1295 = vpop.f32.mrb[0].mxu0
    %v1296 = vadd.f32 %v1211, %v1295
    %v1297 = vpop.f32.mrb[0].mxu0
    %v1298 = vpop.f32.mrb[0].mxu0
    %v1299 = vpop.f32.mrb[0].mxu0
    %1300 = vdwg.mxu0
    %s1301 = sld [smem:[#allocation4 + $0x7]]
    %vm1302 = vcmp.ge.f32.partialorder %v1296, 0.0
    %v1303 = vstv %s1301
    %v1304 = vmul.f32 %v1303, %v1296
    %v1305 = vsel %vm1302, %v1296, %v1304
    %v1306 = vpack.c.bf16 %v1305, %v1305
    %v1307 = vld [vmem:[%s19] sm:$0xf]
    %v1308 = vld [vmem:[%s19 + $0x4] sm:$0xf]
    %v1309 = vld [vmem:[%s19 + $0x8] sm:$0xf]
    %v1310 = vld [vmem:[%s19 + $0xc] sm:$0xf]
    %v1311 = vld [vmem:[%s19 + $0x10] sm:$0xf]
    %v1312 = vld [vmem:[%s19 + $0x14] sm:$0xf]
    %v1313 = vld [vmem:[%s19 + $0x18] sm:$0xf]
    %v1314 = vld [vmem:[%s19 + $0x1c] sm:$0xf]
    %v1315 = vld [vmem:[%s19 + $0x20] sm:$0xf]
    %v1316 = vld [vmem:[%s19 + $0x24] sm:$0xf]
    %v1317 = vld [vmem:[%s19 + $0x28] sm:$0xf]
    %v1318 = vld [vmem:[%s19 + $0x2c] sm:$0xf]
    %v1319 = vld [vmem:[%s19 + $0x30] sm:$0xf]
    %v1320 = vld [vmem:[%s19 + $0x34] sm:$0xf]
    %v1321 = vld [vmem:[%s19 + $0x38] sm:$0xf]
    %v1322 = vld [vmem:[%s19 + $0x3c] sm:$0xf]
    %v1323 = vld [vmem:[%s20] sm:$0x1]
    %v1325 = vlaneseq
    %v1326 = vshrl.u32 %v1325, 7
    %v1327 = vsub.s32 0, %v1326
    %v1328 = vrot.slane %v1323, %v1327
    %v1346 = vunpack.c.l.b16 %v1307
    %v1347 = vunpack.c.l.b16 %v1308
    %v1348 = vunpack.c.l.b16 %v1309
    %v1349 = vunpack.c.l.b16 %v1310
    %v1350 = vunpack.c.l.b16 %v1311
    %v1351 = vunpack.c.l.b16 %v1312
    %v1352 = vunpack.c.l.b16 %v1313
    %v1353 = vunpack.c.l.b16 %v1314
    %v1354 = vunpack.c.l.b16 %v1315
    %v1355 = vunpack.c.l.b16 %v1316
    %v1356 = vunpack.c.l.b16 %v1317
    %v1357 = vunpack.c.l.b16 %v1318
    %v1358 = vunpack.c.l.b16 %v1319
    %v1359 = vunpack.c.l.b16 %v1320
    %v1360 = vunpack.c.l.b16 %v1321
    %v1361 = vunpack.c.l.b16 %v1322
    %v1362 = vpack.c.b16 %v1347, %v1346
    %v1363 = vpack.c.b16 %v1349, %v1348
    %v1364 = vpack.c.b16 %v1351, %v1350
    %v1365 = vpack.c.b16 %v1353, %v1352
    %v1366 = vpack.c.b16 %v1355, %v1354
    %v1367 = vpack.c.b16 %v1357, %v1356
    %v1368 = vpack.c.b16 %v1359, %v1358
    %v1369 = vpack.c.b16 %v1361, %v1360
    %1378 = vmatprep.subr.bf16.mxu0 0
    %1379 = vmatpush1.bf16.msra.mxu0 %v1362
    %1380 = vmatprep.subr.bf16.mxu0 0
    %1381 = vmatpush1.bf16.msra.mxu0 %v1363
    %1382 = vmatprep.subr.bf16.mxu0 0
    %1383 = vmatpush1.bf16.msra.mxu0 %v1364
    %1384 = vmatprep.subr.bf16.mxu0 0
    %1385 = vmatpush1.bf16.msra.mxu0 %v1365
    %1386 = vmatprep.subr.bf16.mxu0 0
    %1387 = vmatpush1.bf16.msra.mxu0 %v1366
    %1388 = vmatprep.subr.bf16.mxu0 0
    %1389 = vmatpush1.bf16.msra.mxu0 %v1367
    %1390 = vmatprep.subr.bf16.mxu0 0
    %1391 = vmatpush1.bf16.msra.mxu0 %v1368
    %1392 = vmatprep.subr.bf16.mxu0 0
    %1393 = vmatpush1.bf16.msra.mxu0 %v1369
    %1394 = vmatprep.subr.bf16.mxu0 0
    %1395 = vmatpush1.bf16.msra.mxu0 0
    %1396 = vmatprep.subr.bf16.mxu0 0
    %1397 = vmatpush1.bf16.msra.mxu0 0
    %1398 = vmatprep.subr.bf16.mxu0 0
    %1399 = vmatpush1.bf16.msra.mxu0 0
    %1400 = vmatprep.subr.bf16.mxu0 0
    %1401 = vmatpush1.bf16.msra.mxu0 0
    %1402 = vmatprep.subr.bf16.mxu0 0
    %1403 = vmatpush1.bf16.msra.mxu0 0
    %1404 = vmatprep.subr.bf16.mxu0 0
    %1405 = vmatpush1.bf16.msra.mxu0 0
    %1406 = vmatprep.subr.bf16.mxu0 0
    %1407 = vmatpush1.bf16.msra.mxu0 0
    %1408 = vmatprep.subr.bf16.mxu0 0
    %1409 = vmatpush1.bf16.msra.mxu0 0
    %1410 = vmatprep.mubr.bf16.mxu0 0
    %1411 = vmatmul.mubr.bf16.gmra.mrb[0].mxu0 %v1306
    %v1412 = vpop.f32.mrb[0].mxu0
    %v1413 = vadd.f32 %v1328, %v1412
    %v1414 = vpop.f32.mrb[0].mxu0
    %v1415 = vpop.f32.mrb[0].mxu0
    %v1416 = vpop.f32.mrb[0].mxu0
    %1417 = vdwg.mxu0
    %s1418 = sld [smem:[#allocation4 + $0x8]]
    %vm1419 = vcmp.ge.f32.partialorder %v1413, 0.0
    %v1420 = vstv %s1418
    %v1421 = vmul.f32 %v1420, %v1413
    %v1422 = vsel %vm1419, %v1413, %v1421
    %v1423 = vpack.c.bf16 %v1422, %v1422
    %v1424 = vld [vmem:[%s21] sm:$0xf]
    %v1425 = vld [vmem:[%s21 + $0x4] sm:$0xf]
    %v1426 = vld [vmem:[%s21 + $0x8] sm:$0xf]
    %v1427 = vld [vmem:[%s21 + $0xc] sm:$0xf]
    %v1428 = vld [vmem:[%s21 + $0x10] sm:$0xf]
    %v1429 = vld [vmem:[%s21 + $0x14] sm:$0xf]
    %v1430 = vld [vmem:[%s21 + $0x18] sm:$0xf]
    %v1431 = vld [vmem:[%s21 + $0x1c] sm:$0xf]
    %v1432 = vld [vmem:[#allocation3] sm:$0x1]
    %v1434 = vlaneseq
    %v1435 = vshrl.u32 %v1434, 7
    %v1436 = vsub.s32 0, %v1435
    %v1437 = vrot.slane %v1432, %v1436
    %v1447 = vunpack.c.l.b16 %v1424
    %v1448 = vunpack.c.l.b16 %v1425
    %v1449 = vunpack.c.l.b16 %v1426
    %v1450 = vunpack.c.l.b16 %v1427
    %v1451 = vunpack.c.l.b16 %v1428
    %v1452 = vunpack.c.l.b16 %v1429
    %v1453 = vunpack.c.l.b16 %v1430
    %v1454 = vunpack.c.l.b16 %v1431
    %v1455 = vpack.c.b16 %v1448, %v1447
    %v1456 = vpack.c.b16 %v1450, %v1449
    %v1457 = vpack.c.b16 %v1452, %v1451
    %v1458 = vpack.c.b16 %v1454, %v1453
    %v1464 = vsel %vm1063, %v1423, 0
    %1466 = vmatprep.subr.bf16.mxu0 0
    %1467 = vmatpush1.bf16.msra.mxu0 %v1455
    %1468 = vmatprep.subr.bf16.mxu0 0
    %1469 = vmatpush1.bf16.msra.mxu0 %v1456
    %1470 = vmatprep.subr.bf16.mxu0 0
    %1471 = vmatpush1.bf16.msra.mxu0 %v1457
    %1472 = vmatprep.subr.bf16.mxu0 0
    %1473 = vmatpush1.bf16.msra.mxu0 %v1458
    %1474 = vmatprep.subr.bf16.mxu0 0
    %1475 = vmatpush1.bf16.msra.mxu0 0
    %1476 = vmatprep.subr.bf16.mxu0 0
    %1477 = vmatpush1.bf16.msra.mxu0 0
    %1478 = vmatprep.subr.bf16.mxu0 0
    %1479 = vmatpush1.bf16.msra.mxu0 0
    %1480 = vmatprep.subr.bf16.mxu0 0
    %1481 = vmatpush1.bf16.msra.mxu0 0
    %1482 = vmatprep.subr.bf16.mxu0 0
    %1483 = vmatpush1.bf16.msra.mxu0 0
    %1484 = vmatprep.subr.bf16.mxu0 0
    %1485 = vmatpush1.bf16.msra.mxu0 0
    %1486 = vmatprep.subr.bf16.mxu0 0
    %1487 = vmatpush1.bf16.msra.mxu0 0
    %1488 = vmatprep.subr.bf16.mxu0 0
    %1489 = vmatpush1.bf16.msra.mxu0 0
    %1490 = vmatprep.subr.bf16.mxu0 0
    %1491 = vmatpush1.bf16.msra.mxu0 0
    %1492 = vmatprep.subr.bf16.mxu0 0
    %1493 = vmatpush1.bf16.msra.mxu0 0
    %1494 = vmatprep.subr.bf16.mxu0 0
    %1495 = vmatpush1.bf16.msra.mxu0 0
    %1496 = vmatprep.subr.bf16.mxu0 0
    %1497 = vmatpush1.bf16.msra.mxu0 0
    %1498 = vmatprep.mubr.bf16.mxu0 0
    %1499 = vmatmul.mubr.bf16.gmra.mrb[0].mxu0 %v1464
    %v1500 = vpop.f32.mrb[0].mxu0
    %v1501 = vadd.f32 %v1437, %v1500
    %v1502 = vpop.f32.mrb[0].mxu0
    %v1503 = vpop.f32.mrb[0].mxu0
    %v1504 = vpop.f32.mrb[0].mxu0
    %1505 = vdwg.mxu0
    %vm1506 = vcmask 7168
    %1507 = vst.msk [vmem:[%s23] sm:$0xff] %vm1506, %v1501
    // Predicated region
    $region146: #{tpu_custom_call.1} parent=1 // pred_check
      _
    $region147: #{tpu_custom_call.1} parent=1 // pred_check_branch
      %1509 = sbr.rel (0) target = $region149
    $region148: #{tpu_custom_call.1} parent=1 // pred_region
      _
    $region149: #{tpu_custom_call.1} parent=1 // pred_fallthru
      _
    // Predicated region
    $region150: #{tpu_custom_call.1} parent=1 // pred_check
      _
    $region151: #{tpu_custom_call.1} parent=1 // pred_check_branch
      %1511 = sbr.rel (0) target = $region153
    $region152: #{tpu_custom_call.1} parent=1 // pred_region
      _
    $region153: #{tpu_custom_call.1} parent=1 // pred_fallthru
      _
    %1512 = vsyncpa [#allocation5], 1
    %1513 = vsyncpa [#allocation9], 1
    %1514 = vsyncpa [#allocation12], 1
    %1515 = vsyncpa [#allocation15], 1
    %1516 = vsyncpa [#allocation18], 1
    %1517 = vsyncpa [#allocation21], 1
    %1518 = vsyncpa [#allocation24], 1
    %1519 = vsyncpa [#allocation6], 1

</llo_original>
